<compile_context>
chip_gen: v7x
topology: tpu7x:2x2x1
jax: 0.10.0
libtpu: 0.0.40
codegen_flags: <defaults>
</compile_context>

<pallas_src>
import functools

import jax
import jax.numpy as jnp
from jax import lax
from jax.experimental import pallas as pl
from jax.experimental.pallas import tpu as pltpu


# ----------------------------------------------------------------------------
# Pallas kernel: one lane-block of fused images per grid step, activations
# are (C, L) with L = images_per_block * H * W on the lane axis.
# ----------------------------------------------------------------------------
def _bottleneck_kernel(x_ref, m_ref, w1_ref, b1_ref, w2_ref, b2_ref,
                       w3_ref, b3_ref, o_ref, *, shifts):
    bf16 = jnp.bfloat16
    f32 = jnp.float32

    x = x_ref[...]                                          # (Cin, L) f32
    L = x.shape[1]

    # ---- conv1 (1x1) + bn1 + relu: bf16 MXU operands, f32 accumulate -------
    h1 = jnp.dot(w1_ref[...], x.astype(bf16), preferred_element_type=f32)
    h1 = jnp.maximum(h1 + b1_ref[...], 0.0)                 # (Cmid, L)

    # ---- conv2 (3x3, dilation=atrous, padding=atrous, stride=1) ------------
    # 9-tap accumulation chain: roll (XLU) + resident boundary-mask multiply
    # fused with the bf16 cast (VPU) + MXU matmul per tap, one f32 accumulator.
    acc = None
    for t, shift in enumerate(shifts):
        patch = h1 if shift == 0 else pltpu.roll(h1, (-shift) % L, axis=1)
        patch = patch.astype(bf16) * m_ref[t]               # (Cmid, L) bf16
        tap = jnp.dot(w2_ref[t], patch, preferred_element_type=f32)
        acc = tap if acc is None else acc + tap
    h2 = jnp.maximum(acc + b2_ref[...], 0.0)                # (Cmid, L)

    # ---- conv3 (1x1, expansion) + bn3 + identity residual + relu -----------
    h3 = jnp.dot(w3_ref[...], h2.astype(bf16), preferred_element_type=f32)
    out = jnp.maximum(h3 + b3_ref[...] + x, 0.0)            # (Cout, L)
    o_ref[...] = out.astype(o_ref.dtype)                    # lane-dense store


# ----------------------------------------------------------------------------
# Wrapper: NCHW in / NCHW out. Batch is fused into the lane axis with
# wrapper-side layout plumbing; eval-mode BN is folded into the conv weights.
# ----------------------------------------------------------------------------
def bottleneck_pallas(x_nchw, w1, w2, w3, s1, b1, s2, b2, s3, b3, *,
                      atrous=1, images_per_block=None):
    """w1: (Cmid, Cin), w2: (Cmid, Cmid, 3, 3), w3: (Cout, Cmid) in PyTorch
    O/I layout; s*/b* are folded eval-mode BN scale/bias vectors."""
    N, Cin, H, W = x_nchw.shape
    Cmid = w1.shape[0]
    Cout = w3.shape[0]
    assert Cout == Cin, "identity residual requires in_chans == out_chans * 4"
    HW = H * W

    nb = N if images_per_block is None else images_per_block
    assert N % nb == 0, "images_per_block must divide the batch"
    L = nb * HW

    # Fold BN scales into the conv weights (per output channel), cast MXU
    # operands to bf16; biases stay f32, shaped (C, 1) for lane broadcast.
    w1_f = (w1 * s1[:, None]).astype(jnp.bfloat16)                 # (Cmid, Cin)
    w2_s = w2 * s2[:, None, None, None]                            # (Cmid,Cmid,3,3)
    w2_t = jnp.transpose(w2_s, (2, 3, 0, 1)).reshape(9, Cmid, Cmid)
    w2_t = w2_t.astype(jnp.bfloat16)                               # (9,Cmid,Cmid)
    w3_f = (w3 * s3[:, None]).astype(jnp.bfloat16)                 # (Cout, Cmid)
    b1c = b1[:, None].astype(jnp.float32)
    b2c = b2[:, None].astype(jnp.float32)
    b3c = b3[:, None].astype(jnp.float32)

    # Static tap shifts + precomputed per-lane boundary masks (hoisted out of
    # the kernel; the pattern repeats per image so one (9, 1, L) table serves
    # every lane block). Mask = 0 also kills any roll wraparound across image
    # boundaries inside the fused lane axis.
    pos = jnp.arange(L, dtype=jnp.int32) % HW
    yy = pos // W
    xx = pos % W
    shifts, masks = [], []
    for ky in range(3):
        for kx in range(3):
            dy = (ky - 1) * atrous
            dx = (kx - 1) * atrous
            shifts.append(dy * W + dx)
            ok = ((yy + dy >= 0) & (yy + dy < H) &
                  (xx + dx >= 0) & (xx + dx < W))
            masks.append(ok)
    mask_arr = jnp.stack(masks).astype(jnp.bfloat16).reshape(9, 1, L)

    # Fuse batch into the lane axis: (N, Cin, H, W) -> (Cin, N*HW).
    x_fused = jnp.transpose(x_nchw.reshape(N, Cin, HW), (1, 0, 2))
    x_fused = x_fused.reshape(Cin, N * HW)

    kern = functools.partial(_bottleneck_kernel, shifts=tuple(shifts))

    def resident(arr):
        nd = arr.ndim
        return pl.BlockSpec(arr.shape, lambda n, _nd=nd: (0,) * _nd)

    out_fused = pl.pallas_call(
        kern,
        out_shape=jax.ShapeDtypeStruct((Cout, N * HW), x_nchw.dtype),
        grid=(N // nb,),
        in_specs=[
            pl.BlockSpec((Cin, L), lambda n: (0, n)),   # x, lane-blocked
            resident(mask_arr),
            resident(w1_f), resident(b1c),
            resident(w2_t), resident(b2c),
            resident(w3_f), resident(b3c),
        ],
        out_specs=pl.BlockSpec((Cout, L), lambda n: (0, n)),
        compiler_params=pltpu.CompilerParams(
            dimension_semantics=("parallel",)),
    )(x_fused, mask_arr, w1_f, b1c, w2_t, b2c, w3_f, b3c)

    out = out_fused.reshape(Cout, N, HW)
    return jnp.transpose(out, (1, 0, 2)).reshape(N, Cout, H, W)


# ----------------------------------------------------------------------------
# Pure-JAX reference (f32, HIGHEST precision, eval-mode BN).
# ----------------------------------------------------------------------------
def bottleneck_ref(x, w1, w2, w3, s1, b1, s2, b2, s3, b3, *, atrous=1):
    dn = ('NCHW', 'OIHW', 'NCHW')
    hp = lax.Precision.HIGHEST

    def bn(h, s, b):
        return h * s[None, :, None, None] + b[None, :, None, None]

    h = lax.conv_general_dilated(x, w1[:, :, None, None], (1, 1), 'VALID',
                                 dimension_numbers=dn, precision=hp)
    h = jnp.maximum(bn(h, s1, b1), 0.0)
    h = lax.conv_general_dilated(h, w2, (1, 1),
                                 [(atrous, atrous), (atrous, atrous)],
                                 rhs_dilation=(atrous, atrous),
                                 dimension_numbers=dn, precision=hp)
    h = jnp.maximum(bn(h, s2, b2), 0.0)
    h = lax.conv_general_dilated(h, w3[:, :, None, None], (1, 1), 'VALID',
                                 dimension_numbers=dn, precision=hp)
    h = bn(h, s3, b3)
    return jnp.maximum(h + x, 0.0)


def _fold_bn(gamma, beta, mean, var, eps=1e-5):
    scale = gamma / jnp.sqrt(var + eps)
    bias = beta - mean * scale
    return scale, bias


def _run_case(key, *, N, Cin, Cmid, H, W, atrous):
    Cout = 4 * Cmid
    assert Cout == Cin
    ks = jax.random.split(key, 7)

    x = jax.random.normal(ks[0], (N, Cin, H, W), jnp.float32)
    w1 = 0.2 * jax.random.normal(ks[1], (Cmid, Cin), jnp.float32)
    w2 = 0.2 * jax.random.normal(ks[2], (Cmid, Cmid, 3, 3), jnp.float32)
    w3 = 0.2 * jax.random.normal(ks[3], (Cout, Cmid), jnp.float32)

    def bn_params(k, c):
        ka, kb, kc, kd = jax.random.split(k, 4)
        gamma = 1.0 + 0.1 * jax.random.normal(ka, (c,), jnp.float32)
        beta = 0.1 * jax.random.normal(kb, (c,), jnp.float32)
        mean = 0.1 * jax.random.normal(kc, (c,), jnp.float32)
        var = jax.random.uniform(kd, (c,), jnp.float32, 0.5, 1.5)
        return _fold_bn(gamma, beta, mean, var)

    s1, b1 = bn_params(ks[4], Cmid)
    s2, b2 = bn_params(ks[5], Cmid)
    s3, b3 = bn_params(ks[6], Cout)

    out = bottleneck_pallas(x, w1, w2, w3, s1, b1, s2, b2, s3, b3,
                            atrous=atrous)
    out = jax.block_until_ready(out)
    ref = bottleneck_ref(x, w1, w2, w3, s1, b1, s2, b2, s3, b3, atrous=atrous)
    ref = jax.block_until_ready(ref)

    assert out.shape == (N, Cout, H, W)
    err = float(jnp.max(jnp.abs(out - ref)))
    # bf16 MXU operands with f32 accumulation vs f32 HIGHEST reference.
    assert jnp.allclose(out, ref, atol=5e-2, rtol=5e-2), err
    return err


if __name__ == "__main__":
    key = jax.random.PRNGKey(0)
    k1, k2 = jax.random.split(key)

    # Bottleneck(in_chans=32, out_chans=8, stride=1, atrous=1), 16x16 images;
    # expansion=4 -> output channels = 32 == in_chans (identity residual OK).
    _run_case(k1, N=2, Cin=32, Cmid=8, H=16, W=16, atrous=1)

    # Dilated + non-square validation of the roll-and-mask path.
    _run_case(k2, N=2, Cin=32, Cmid=8, H=8, W=16, atrous=2)

    print("KERNEL_OK")
</pallas_src>

<mosaic_0001>
module attributes {stable_mosaic.version = 11 : i64} {
  func.func @_bottleneck_kernel(%arg0: i32, %arg1: memref<32x512xf32, #tpu.memory_space<vmem>>, %arg2: memref<9x1x512xbf16, #tpu.memory_space<vmem>>, %arg3: memref<8x32xbf16, #tpu.memory_space<vmem>>, %arg4: memref<8x1xf32, #tpu.memory_space<vmem>>, %arg5: memref<9x8x8xbf16, #tpu.memory_space<vmem>>, %arg6: memref<8x1xf32, #tpu.memory_space<vmem>>, %arg7: memref<32x8xbf16, #tpu.memory_space<vmem>>, %arg8: memref<32x1xf32, #tpu.memory_space<vmem>>, %arg9: memref<32x512xf32, #tpu.memory_space<vmem>>) attributes {dimension_semantics = [#tpu.dimension_semantics<parallel>], iteration_bounds = array<i64: 1>, scalar_prefetch = 0 : i64, scratch_operands = 0 : i64, tpu.core_type = #tpu.core_type<tc>, window_params = [{transform_indices = @transform_0, window_bounds = array<i64: 32, 512>}, {pipeline_mode = #tpu.pipeline_mode<synchronous>, transform_indices = @transform_1, window_bounds = array<i64: 9, 1, 512>}, {pipeline_mode = #tpu.pipeline_mode<synchronous>, transform_indices = @transform_2, window_bounds = array<i64: 8, 32>}, {pipeline_mode = #tpu.pipeline_mode<synchronous>, transform_indices = @transform_3, window_bounds = array<i64: 8, 1>}, {pipeline_mode = #tpu.pipeline_mode<synchronous>, transform_indices = @transform_4, window_bounds = array<i64: 9, 8, 8>}, {pipeline_mode = #tpu.pipeline_mode<synchronous>, transform_indices = @transform_5, window_bounds = array<i64: 8, 1>}, {pipeline_mode = #tpu.pipeline_mode<synchronous>, transform_indices = @transform_6, window_bounds = array<i64: 32, 8>}, {pipeline_mode = #tpu.pipeline_mode<synchronous>, transform_indices = @transform_7, window_bounds = array<i64: 32, 1>}, {transform_indices = @transform_8, window_bounds = array<i64: 32, 512>}]} {
    %c0 = arith.constant 0 : index
    %c0_0 = arith.constant 0 : index
    %0 = vector.load %arg1[%c0, %c0_0] : memref<32x512xf32, #tpu.memory_space<vmem>>, vector<32x512xf32>
    %c0_1 = arith.constant 0 : index
    %c0_2 = arith.constant 0 : index
    %1 = vector.load %arg3[%c0_1, %c0_2] : memref<8x32xbf16, #tpu.memory_space<vmem>>, vector<8x32xbf16>
    %2 = arith.truncf %0 : vector<32x512xf32> to vector<32x512xbf16>
    %cst = arith.constant dense<0.000000e+00> : vector<8x512xf32>
    %3 = tpu.matmul %1, %2, %cst {dimension_numbers = #tpu.dot_dimension_numbers<[1], [0], [0], [1], [0, 0, 1, 1], [], []>} : vector<8x32xbf16>, vector<32x512xbf16>, vector<8x512xf32> -> vector<8x512xf32>
    %c0_3 = arith.constant 0 : index
    %c0_4 = arith.constant 0 : index
    %4 = vector.load %arg4[%c0_3, %c0_4] : memref<8x1xf32, #tpu.memory_space<vmem>>, vector<8x1xf32>
    %5 = vector.broadcast %4 : vector<8x1xf32> to vector<8x512xf32>
    %6 = arith.addf %3, %5 : vector<8x512xf32>
    %cst_5 = arith.constant 0.000000e+00 : f32
    %7 = vector.broadcast %cst_5 : f32 to vector<8x512xf32>
    %8 = arith.maximumf %6, %7 : vector<8x512xf32>
    %c17_i32 = arith.constant 17 : i32
    %9 = tpu.dynamic_rotate %8 by %c17_i32 dim 1 : vector<8x512xf32>, i32 -> vector<8x512xf32>
    %10 = arith.truncf %9 : vector<8x512xf32> to vector<8x512xbf16>
    %c0_6 = arith.constant 0 : index
    %c0_7 = arith.constant 0 : index
    %c0_8 = arith.constant 0 : index
    %11 = vector.load %arg2[%c0_6, %c0_7, %c0_8] : memref<9x1x512xbf16, #tpu.memory_space<vmem>>, vector<1x1x512xbf16>
    %12 = vector.shape_cast %11 : vector<1x1x512xbf16> to vector<1x512xbf16>
    %13 = vector.broadcast %12 : vector<1x512xbf16> to vector<8x512xbf16>
    %14 = arith.mulf %10, %13 : vector<8x512xbf16>
    %c0_9 = arith.constant 0 : index
    %c0_10 = arith.constant 0 : index
    %c0_11 = arith.constant 0 : index
    %15 = vector.load %arg5[%c0_9, %c0_10, %c0_11] : memref<9x8x8xbf16, #tpu.memory_space<vmem>>, vector<1x8x8xbf16>
    %16 = vector.shape_cast %15 : vector<1x8x8xbf16> to vector<8x8xbf16>
    %cst_12 = arith.constant dense<0.000000e+00> : vector<8x512xf32>
    %17 = tpu.matmul %16, %14, %cst_12 {dimension_numbers = #tpu.dot_dimension_numbers<[1], [0], [0], [1], [0, 0, 1, 1], [], []>} : vector<8x8xbf16>, vector<8x512xbf16>, vector<8x512xf32> -> vector<8x512xf32>
    %c16_i32 = arith.constant 16 : i32
    %18 = tpu.dynamic_rotate %8 by %c16_i32 dim 1 : vector<8x512xf32>, i32 -> vector<8x512xf32>
    %19 = arith.truncf %18 : vector<8x512xf32> to vector<8x512xbf16>
    %c1 = arith.constant 1 : index
    %c0_13 = arith.constant 0 : index
    %c0_14 = arith.constant 0 : index
    %20 = vector.load %arg2[%c1, %c0_13, %c0_14] : memref<9x1x512xbf16, #tpu.memory_space<vmem>>, vector<1x1x512xbf16>
    %21 = vector.shape_cast %20 : vector<1x1x512xbf16> to vector<1x512xbf16>
    %22 = vector.broadcast %21 : vector<1x512xbf16> to vector<8x512xbf16>
    %23 = arith.mulf %19, %22 : vector<8x512xbf16>
    %c1_15 = arith.constant 1 : index
    %c0_16 = arith.constant 0 : index
    %c0_17 = arith.constant 0 : index
    %24 = vector.load %arg5[%c1_15, %c0_16, %c0_17] : memref<9x8x8xbf16, #tpu.memory_space<vmem>>, vector<1x8x8xbf16>
    %25 = vector.shape_cast %24 : vector<1x8x8xbf16> to vector<8x8xbf16>
    %cst_18 = arith.constant dense<0.000000e+00> : vector<8x512xf32>
    %26 = tpu.matmul %25, %23, %cst_18 {dimension_numbers = #tpu.dot_dimension_numbers<[1], [0], [0], [1], [0, 0, 1, 1], [], []>} : vector<8x8xbf16>, vector<8x512xbf16>, vector<8x512xf32> -> vector<8x512xf32>
    %27 = arith.addf %17, %26 : vector<8x512xf32>
    %c15_i32 = arith.constant 15 : i32
    %28 = tpu.dynamic_rotate %8 by %c15_i32 dim 1 : vector<8x512xf32>, i32 -> vector<8x512xf32>
    %29 = arith.truncf %28 : vector<8x512xf32> to vector<8x512xbf16>
    %c2 = arith.constant 2 : index
    %c0_19 = arith.constant 0 : index
    %c0_20 = arith.constant 0 : index
    %30 = vector.load %arg2[%c2, %c0_19, %c0_20] : memref<9x1x512xbf16, #tpu.memory_space<vmem>>, vector<1x1x512xbf16>
    %31 = vector.shape_cast %30 : vector<1x1x512xbf16> to vector<1x512xbf16>
    %32 = vector.broadcast %31 : vector<1x512xbf16> to vector<8x512xbf16>
    %33 = arith.mulf %29, %32 : vector<8x512xbf16>
    %c2_21 = arith.constant 2 : index
    %c0_22 = arith.constant 0 : index
    %c0_23 = arith.constant 0 : index
    %34 = vector.load %arg5[%c2_21, %c0_22, %c0_23] : memref<9x8x8xbf16, #tpu.memory_space<vmem>>, vector<1x8x8xbf16>
    %35 = vector.shape_cast %34 : vector<1x8x8xbf16> to vector<8x8xbf16>
    %cst_24 = arith.constant dense<0.000000e+00> : vector<8x512xf32>
    %36 = tpu.matmul %35, %33, %cst_24 {dimension_numbers = #tpu.dot_dimension_numbers<[1], [0], [0], [1], [0, 0, 1, 1], [], []>} : vector<8x8xbf16>, vector<8x512xbf16>, vector<8x512xf32> -> vector<8x512xf32>
    %37 = arith.addf %27, %36 : vector<8x512xf32>
    %c1_i32 = arith.constant 1 : i32
    %38 = tpu.dynamic_rotate %8 by %c1_i32 dim 1 : vector<8x512xf32>, i32 -> vector<8x512xf32>
    %39 = arith.truncf %38 : vector<8x512xf32> to vector<8x512xbf16>
    %c3 = arith.constant 3 : index
    %c0_25 = arith.constant 0 : index
    %c0_26 = arith.constant 0 : index
    %40 = vector.load %arg2[%c3, %c0_25, %c0_26] : memref<9x1x512xbf16, #tpu.memory_space<vmem>>, vector<1x1x512xbf16>
    %41 = vector.shape_cast %40 : vector<1x1x512xbf16> to vector<1x512xbf16>
    %42 = vector.broadcast %41 : vector<1x512xbf16> to vector<8x512xbf16>
    %43 = arith.mulf %39, %42 : vector<8x512xbf16>
    %c3_27 = arith.constant 3 : index
    %c0_28 = arith.constant 0 : index
    %c0_29 = arith.constant 0 : index
    %44 = vector.load %arg5[%c3_27, %c0_28, %c0_29] : memref<9x8x8xbf16, #tpu.memory_space<vmem>>, vector<1x8x8xbf16>
    %45 = vector.shape_cast %44 : vector<1x8x8xbf16> to vector<8x8xbf16>
    %cst_30 = arith.constant dense<0.000000e+00> : vector<8x512xf32>
    %46 = tpu.matmul %45, %43, %cst_30 {dimension_numbers = #tpu.dot_dimension_numbers<[1], [0], [0], [1], [0, 0, 1, 1], [], []>} : vector<8x8xbf16>, vector<8x512xbf16>, vector<8x512xf32> -> vector<8x512xf32>
    %47 = arith.addf %37, %46 : vector<8x512xf32>
    %48 = arith.truncf %8 : vector<8x512xf32> to vector<8x512xbf16>
    %c4 = arith.constant 4 : index
    %c0_31 = arith.constant 0 : index
    %c0_32 = arith.constant 0 : index
    %49 = vector.load %arg2[%c4, %c0_31, %c0_32] : memref<9x1x512xbf16, #tpu.memory_space<vmem>>, vector<1x1x512xbf16>
    %50 = vector.shape_cast %49 : vector<1x1x512xbf16> to vector<1x512xbf16>
    %51 = vector.broadcast %50 : vector<1x512xbf16> to vector<8x512xbf16>
    %52 = arith.mulf %48, %51 : vector<8x512xbf16>
    %c4_33 = arith.constant 4 : index
    %c0_34 = arith.constant 0 : index
    %c0_35 = arith.constant 0 : index
    %53 = vector.load %arg5[%c4_33, %c0_34, %c0_35] : memref<9x8x8xbf16, #tpu.memory_space<vmem>>, vector<1x8x8xbf16>
    %54 = vector.shape_cast %53 : vector<1x8x8xbf16> to vector<8x8xbf16>
    %cst_36 = arith.constant dense<0.000000e+00> : vector<8x512xf32>
    %55 = tpu.matmul %54, %52, %cst_36 {dimension_numbers = #tpu.dot_dimension_numbers<[1], [0], [0], [1], [0, 0, 1, 1], [], []>} : vector<8x8xbf16>, vector<8x512xbf16>, vector<8x512xf32> -> vector<8x512xf32>
    %56 = arith.addf %47, %55 : vector<8x512xf32>
    %c511_i32 = arith.constant 511 : i32
    %57 = tpu.dynamic_rotate %8 by %c511_i32 dim 1 : vector<8x512xf32>, i32 -> vector<8x512xf32>
    %58 = arith.truncf %57 : vector<8x512xf32> to vector<8x512xbf16>
    %c5 = arith.constant 5 : index
    %c0_37 = arith.constant 0 : index
    %c0_38 = arith.constant 0 : index
    %59 = vector.load %arg2[%c5, %c0_37, %c0_38] : memref<9x1x512xbf16, #tpu.memory_space<vmem>>, vector<1x1x512xbf16>
    %60 = vector.shape_cast %59 : vector<1x1x512xbf16> to vector<1x512xbf16>
    %61 = vector.broadcast %60 : vector<1x512xbf16> to vector<8x512xbf16>
    %62 = arith.mulf %58, %61 : vector<8x512xbf16>
    %c5_39 = arith.constant 5 : index
    %c0_40 = arith.constant 0 : index
    %c0_41 = arith.constant 0 : index
    %63 = vector.load %arg5[%c5_39, %c0_40, %c0_41] : memref<9x8x8xbf16, #tpu.memory_space<vmem>>, vector<1x8x8xbf16>
    %64 = vector.shape_cast %63 : vector<1x8x8xbf16> to vector<8x8xbf16>
    %cst_42 = arith.constant dense<0.000000e+00> : vector<8x512xf32>
    %65 = tpu.matmul %64, %62, %cst_42 {dimension_numbers = #tpu.dot_dimension_numbers<[1], [0], [0], [1], [0, 0, 1, 1], [], []>} : vector<8x8xbf16>, vector<8x512xbf16>, vector<8x512xf32> -> vector<8x512xf32>
    %66 = arith.addf %56, %65 : vector<8x512xf32>
    %c497_i32 = arith.constant 497 : i32
    %67 = tpu.dynamic_rotate %8 by %c497_i32 dim 1 : vector<8x512xf32>, i32 -> vector<8x512xf32>
    %68 = arith.truncf %67 : vector<8x512xf32> to vector<8x512xbf16>
    %c6 = arith.constant 6 : index
    %c0_43 = arith.constant 0 : index
    %c0_44 = arith.constant 0 : index
    %69 = vector.load %arg2[%c6, %c0_43, %c0_44] : memref<9x1x512xbf16, #tpu.memory_space<vmem>>, vector<1x1x512xbf16>
    %70 = vector.shape_cast %69 : vector<1x1x512xbf16> to vector<1x512xbf16>
    %71 = vector.broadcast %70 : vector<1x512xbf16> to vector<8x512xbf16>
    %72 = arith.mulf %68, %71 : vector<8x512xbf16>
    %c6_45 = arith.constant 6 : index
    %c0_46 = arith.constant 0 : index
    %c0_47 = arith.constant 0 : index
    %73 = vector.load %arg5[%c6_45, %c0_46, %c0_47] : memref<9x8x8xbf16, #tpu.memory_space<vmem>>, vector<1x8x8xbf16>
    %74 = vector.shape_cast %73 : vector<1x8x8xbf16> to vector<8x8xbf16>
    %cst_48 = arith.constant dense<0.000000e+00> : vector<8x512xf32>
    %75 = tpu.matmul %74, %72, %cst_48 {dimension_numbers = #tpu.dot_dimension_numbers<[1], [0], [0], [1], [0, 0, 1, 1], [], []>} : vector<8x8xbf16>, vector<8x512xbf16>, vector<8x512xf32> -> vector<8x512xf32>
    %76 = arith.addf %66, %75 : vector<8x512xf32>
    %c496_i32 = arith.constant 496 : i32
    %77 = tpu.dynamic_rotate %8 by %c496_i32 dim 1 : vector<8x512xf32>, i32 -> vector<8x512xf32>
    %78 = arith.truncf %77 : vector<8x512xf32> to vector<8x512xbf16>
    %c7 = arith.constant 7 : index
    %c0_49 = arith.constant 0 : index
    %c0_50 = arith.constant 0 : index
    %79 = vector.load %arg2[%c7, %c0_49, %c0_50] : memref<9x1x512xbf16, #tpu.memory_space<vmem>>, vector<1x1x512xbf16>
    %80 = vector.shape_cast %79 : vector<1x1x512xbf16> to vector<1x512xbf16>
    %81 = vector.broadcast %80 : vector<1x512xbf16> to vector<8x512xbf16>
    %82 = arith.mulf %78, %81 : vector<8x512xbf16>
    %c7_51 = arith.constant 7 : index
    %c0_52 = arith.constant 0 : index
    %c0_53 = arith.constant 0 : index
    %83 = vector.load %arg5[%c7_51, %c0_52, %c0_53] : memref<9x8x8xbf16, #tpu.memory_space<vmem>>, vector<1x8x8xbf16>
    %84 = vector.shape_cast %83 : vector<1x8x8xbf16> to vector<8x8xbf16>
    %cst_54 = arith.constant dense<0.000000e+00> : vector<8x512xf32>
    %85 = tpu.matmul %84, %82, %cst_54 {dimension_numbers = #tpu.dot_dimension_numbers<[1], [0], [0], [1], [0, 0, 1, 1], [], []>} : vector<8x8xbf16>, vector<8x512xbf16>, vector<8x512xf32> -> vector<8x512xf32>
    %86 = arith.addf %76, %85 : vector<8x512xf32>
    %c495_i32 = arith.constant 495 : i32
    %87 = tpu.dynamic_rotate %8 by %c495_i32 dim 1 : vector<8x512xf32>, i32 -> vector<8x512xf32>
    %88 = arith.truncf %87 : vector<8x512xf32> to vector<8x512xbf16>
    %c8 = arith.constant 8 : index
    %c0_55 = arith.constant 0 : index
    %c0_56 = arith.constant 0 : index
    %89 = vector.load %arg2[%c8, %c0_55, %c0_56] : memref<9x1x512xbf16, #tpu.memory_space<vmem>>, vector<1x1x512xbf16>
    %90 = vector.shape_cast %89 : vector<1x1x512xbf16> to vector<1x512xbf16>
    %91 = vector.broadcast %90 : vector<1x512xbf16> to vector<8x512xbf16>
    %92 = arith.mulf %88, %91 : vector<8x512xbf16>
    %c8_57 = arith.constant 8 : index
    %c0_58 = arith.constant 0 : index
    %c0_59 = arith.constant 0 : index
    %93 = vector.load %arg5[%c8_57, %c0_58, %c0_59] : memref<9x8x8xbf16, #tpu.memory_space<vmem>>, vector<1x8x8xbf16>
    %94 = vector.shape_cast %93 : vector<1x8x8xbf16> to vector<8x8xbf16>
    %cst_60 = arith.constant dense<0.000000e+00> : vector<8x512xf32>
    %95 = tpu.matmul %94, %92, %cst_60 {dimension_numbers = #tpu.dot_dimension_numbers<[1], [0], [0], [1], [0, 0, 1, 1], [], []>} : vector<8x8xbf16>, vector<8x512xbf16>, vector<8x512xf32> -> vector<8x512xf32>
    %96 = arith.addf %86, %95 : vector<8x512xf32>
    %c0_61 = arith.constant 0 : index
    %c0_62 = arith.constant 0 : index
    %97 = vector.load %arg6[%c0_61, %c0_62] : memref<8x1xf32, #tpu.memory_space<vmem>>, vector<8x1xf32>
    %98 = vector.broadcast %97 : vector<8x1xf32> to vector<8x512xf32>
    %99 = arith.addf %96, %98 : vector<8x512xf32>
    %cst_63 = arith.constant 0.000000e+00 : f32
    %100 = vector.broadcast %cst_63 : f32 to vector<8x512xf32>
    %101 = arith.maximumf %99, %100 : vector<8x512xf32>
    %c0_64 = arith.constant 0 : index
    %c0_65 = arith.constant 0 : index
    %102 = vector.load %arg7[%c0_64, %c0_65] : memref<32x8xbf16, #tpu.memory_space<vmem>>, vector<32x8xbf16>
    %103 = arith.truncf %101 : vector<8x512xf32> to vector<8x512xbf16>
    %cst_66 = arith.constant dense<0.000000e+00> : vector<32x512xf32>
    %104 = tpu.matmul %102, %103, %cst_66 {dimension_numbers = #tpu.dot_dimension_numbers<[1], [0], [0], [1], [0, 0, 1, 1], [], []>} : vector<32x8xbf16>, vector<8x512xbf16>, vector<32x512xf32> -> vector<32x512xf32>
    %c0_67 = arith.constant 0 : index
    %c0_68 = arith.constant 0 : index
    %105 = vector.load %arg8[%c0_67, %c0_68] : memref<32x1xf32, #tpu.memory_space<vmem>>, vector<32x1xf32>
    %106 = vector.broadcast %105 : vector<32x1xf32> to vector<32x512xf32>
    %107 = arith.addf %104, %106 : vector<32x512xf32>
    %108 = arith.addf %107, %0 : vector<32x512xf32>
    %cst_69 = arith.constant 0.000000e+00 : f32
    %109 = vector.broadcast %cst_69 : f32 to vector<32x512xf32>
    %110 = arith.maximumf %108, %109 : vector<32x512xf32>
    %c0_70 = arith.constant 0 : index
    %c0_71 = arith.constant 0 : index
    %111 = vector.load %arg9[%c0_70, %c0_71] : memref<32x512xf32, #tpu.memory_space<vmem>>, vector<32x512xf32>
    tpu.vector_store %arg9[%c0_70, %c0_71], %110 {strides = array<i32>} : memref<32x512xf32, #tpu.memory_space<vmem>>, vector<32x512xf32>,
    return
  }
  func.func @transform_0(%arg0: i32) -> (i32, i32) {
    %c0_i32 = arith.constant 0 : i32
    %c0_i32_0 = arith.constant 0 : i32
    return %c0_i32, %arg0 : i32, i32
  }
  func.func @transform_1(%arg0: i32) -> (i32, i32, i32) {
    %c0_i32 = arith.constant 0 : i32
    %c0_i32_0 = arith.constant 0 : i32
    %c0_i32_1 = arith.constant 0 : i32
    %c0_i32_2 = arith.constant 0 : i32
    return %c0_i32, %c0_i32_0, %c0_i32_1 : i32, i32, i32
  }
  func.func @transform_2(%arg0: i32) -> (i32, i32) {
    %c0_i32 = arith.constant 0 : i32
    %c0_i32_0 = arith.constant 0 : i32
    %c0_i32_1 = arith.constant 0 : i32
    return %c0_i32, %c0_i32_0 : i32, i32
  }
  func.func @transform_3(%arg0: i32) -> (i32, i32) {
    %c0_i32 = arith.constant 0 : i32
    %c0_i32_0 = arith.constant 0 : i32
    %c0_i32_1 = arith.constant 0 : i32
    return %c0_i32, %c0_i32_0 : i32, i32
  }
  func.func @transform_4(%arg0: i32) -> (i32, i32, i32) {
    %c0_i32 = arith.constant 0 : i32
    %c0_i32_0 = arith.constant 0 : i32
    %c0_i32_1 = arith.constant 0 : i32
    %c0_i32_2 = arith.constant 0 : i32
    return %c0_i32, %c0_i32_0, %c0_i32_1 : i32, i32, i32
  }
  func.func @transform_5(%arg0: i32) -> (i32, i32) {
    %c0_i32 = arith.constant 0 : i32
    %c0_i32_0 = arith.constant 0 : i32
    %c0_i32_1 = arith.constant 0 : i32
    return %c0_i32, %c0_i32_0 : i32, i32
  }
  func.func @transform_6(%arg0: i32) -> (i32, i32) {
    %c0_i32 = arith.constant 0 : i32
    %c0_i32_0 = arith.constant 0 : i32
    %c0_i32_1 = arith.constant 0 : i32
    return %c0_i32, %c0_i32_0 : i32, i32
  }
  func.func @transform_7(%arg0: i32) -> (i32, i32) {
    %c0_i32 = arith.constant 0 : i32
    %c0_i32_0 = arith.constant 0 : i32
    %c0_i32_1 = arith.constant 0 : i32
    return %c0_i32, %c0_i32_0 : i32, i32
  }
  func.func @transform_8(%arg0: i32) -> (i32, i32) {
    %c0_i32 = arith.constant 0 : i32
    %c0_i32_0 = arith.constant 0 : i32
    return %c0_i32, %arg0 : i32, i32
  }
}

</mosaic_0001>

<llo_original>
// kernel: tpu_custom_call.1
$region0: #{tpu_custom_call.1}
  #allocation0 [shape = 'u32[]', space=smem, size = 0x4, offset = 0x4, fixed_abs, tag = 'smem constant byte address 0x4 - core index']
  #allocation1 [shape = 'u32[144,128]{1,0:T(1,128)}', space=vmem, size = 0x12000, scoped, tag = 'internal scratch']
  %s0 = inlined_call_operand.vmem [shape: f32[32,512], index: 0, kind: input, shape index: {}]
  %s1 = inlined_call_operand.vmem [shape: bf16[9,1,512], index: 1, kind: input, shape index: {}]
  %s2 = inlined_call_operand.vmem [shape: bf16[8,32], index: 2, kind: input, shape index: {}]
  %s3 = inlined_call_operand.vmem [shape: f32[8,1], index: 3, kind: input, shape index: {}]
  %s4 = inlined_call_operand.vmem [shape: bf16[9,8,8], index: 4, kind: input, shape index: {}]
  %s5 = inlined_call_operand.vmem [shape: f32[8,1], index: 5, kind: input, shape index: {}]
  %s6 = inlined_call_operand.vmem [shape: bf16[32,8], index: 6, kind: input, shape index: {}]
  %s7 = inlined_call_operand.vmem [shape: f32[32,1], index: 7, kind: input, shape index: {}]
  %s8 = inlined_call_operand.hbm [shape: f32[32,512], index: 8, kind: output, shape index: {}]
  %s9 = sld [smem:[#allocation0]]
  $region42: #{tpu_custom_call.1} parent=0
    _
  %s11 = ssub.s32 1, %s9
  %s12 = scalar_select 0, %s11, %s9
  $region1: #{tpu_custom_call.1} parent=0
    #allocation2 [shape = 'u8[65536]{0}', space=vmem, size = 0x10000, scoped, tag = 'output window, operand 0, single buffered']
    #allocation3 [shape = 's32[1]{0}', space=sflag, size = 0x4, scoped, tag = 'scoped memory for tpu_custom_call.1']
    %13 = vsyncpa [#allocation3], 0
    // Predicated region
    $region2: #{tpu_custom_call.1} parent=1 // pred_check
      _
    $region3: #{tpu_custom_call.1} parent=1 // pred_check_branch
      %15 = sbr.rel (0) target = $region5
    $region4: #{tpu_custom_call.1} parent=1 // pred_region
      _
    $region5: #{tpu_custom_call.1} parent=1 // pred_fallthru
      _
    // Predicated region
    $region6: #{tpu_custom_call.1} parent=1 // pred_check
      _
    $region7: #{tpu_custom_call.1} parent=1 // pred_check_branch
      %17 = sbr.rel (0) target = $region9
    $region8: #{tpu_custom_call.1} parent=1 // pred_region
      _
    $region9: #{tpu_custom_call.1} parent=1 // pred_fallthru
      _
    // Predicated region
    $region10: #{tpu_custom_call.1} parent=1 // pred_check
      _
    $region11: #{tpu_custom_call.1} parent=1 // pred_check_branch
      %19 = sbr.rel (0) target = $region13
    $region12: #{tpu_custom_call.1} parent=1 // pred_region
      _
    $region13: #{tpu_custom_call.1} parent=1 // pred_fallthru
      _
    // Predicated region
    $region14: #{tpu_custom_call.1} parent=1 // pred_check
      _
    $region15: #{tpu_custom_call.1} parent=1 // pred_check_branch
      %21 = sbr.rel (0) target = $region17
    $region16: #{tpu_custom_call.1} parent=1 // pred_region
      _
    $region17: #{tpu_custom_call.1} parent=1 // pred_fallthru
      _
    // Predicated region
    $region18: #{tpu_custom_call.1} parent=1 // pred_check
      _
    $region19: #{tpu_custom_call.1} parent=1 // pred_check_branch
      %23 = sbr.rel (0) target = $region21
    $region20: #{tpu_custom_call.1} parent=1 // pred_region
      _
    $region21: #{tpu_custom_call.1} parent=1 // pred_fallthru
      _
    // Predicated region
    $region22: #{tpu_custom_call.1} parent=1 // pred_check
      _
    $region23: #{tpu_custom_call.1} parent=1 // pred_check_branch
      %25 = sbr.rel (0) target = $region25
    $region24: #{tpu_custom_call.1} parent=1 // pred_region
      _
    $region25: #{tpu_custom_call.1} parent=1 // pred_fallthru
      _
    // Predicated region
    $region26: #{tpu_custom_call.1} parent=1 // pred_check
      _
    $region27: #{tpu_custom_call.1} parent=1 // pred_check_branch
      %27 = sbr.rel (0) target = $region29
    $region28: #{tpu_custom_call.1} parent=1 // pred_region
      _
    $region29: #{tpu_custom_call.1} parent=1 // pred_fallthru
      _
    // Predicated region
    $region30: #{tpu_custom_call.1} parent=1 // pred_check
      _
    $region31: #{tpu_custom_call.1} parent=1 // pred_check_branch
      %29 = sbr.rel (0) target = $region33
    $region32: #{tpu_custom_call.1} parent=1 // pred_region
      _
    $region33: #{tpu_custom_call.1} parent=1 // pred_fallthru
      _
    %v31 = vld [vmem:[%s0] sm:$0xff]
    %v32 = vld [vmem:[%s0 + $0x8] sm:$0xff]
    %v33 = vld [vmem:[%s0 + $0x10] sm:$0xff]
    %v34 = vld [vmem:[%s0 + $0x18] sm:$0xff]
    %v35 = vld [vmem:[%s0 + $0x20] sm:$0xff]
    %v36 = vld [vmem:[%s0 + $0x28] sm:$0xff]
    %v37 = vld [vmem:[%s0 + $0x30] sm:$0xff]
    %v38 = vld [vmem:[%s0 + $0x38] sm:$0xff]
    %v39 = vld [vmem:[%s0 + $0x40] sm:$0xff]
    %v40 = vld [vmem:[%s0 + $0x48] sm:$0xff]
    %v41 = vld [vmem:[%s0 + $0x50] sm:$0xff]
    %v42 = vld [vmem:[%s0 + $0x58] sm:$0xff]
    %v43 = vld [vmem:[%s0 + $0x60] sm:$0xff]
    %v44 = vld [vmem:[%s0 + $0x68] sm:$0xff]
    %v45 = vld [vmem:[%s0 + $0x70] sm:$0xff]
    %v46 = vld [vmem:[%s0 + $0x78] sm:$0xff]
    %v47 = vld [vmem:[%s2] sm:$0xf]
    %v48 = vpack.c.bf16 %v35, %v31
    %v49 = vpack.c.bf16 %v36, %v32
    %v50 = vpack.c.bf16 %v37, %v33
    %v51 = vpack.c.bf16 %v38, %v34
    %v52 = vpack.c.bf16 %v43, %v39
    %v53 = vpack.c.bf16 %v44, %v40
    %v54 = vpack.c.bf16 %v45, %v41
    %v55 = vpack.c.bf16 %v46, %v42
    %v56 = vld [vmem:[%s3] sm:$0xff]
    %58 = vset.pattern.permute.xlu0 0
    %59 = vperm.xlu0 %58, %v56
    %v60 = vpop.permute.xlu0 %59
    %vm62 = vcmask 261120
    %v64 = vsel %vm62, %v47, 0
    %66 = vmatprep.subr.bf16.mxu0 %v49
    %67 = vmatpush1.bf16.msra.mxu0 %v48
    %68 = vmatprep.subr.bf16.mxu0 %v53
    %69 = vmatpush1.bf16.msra.mxu0 %v52
    %70 = vmatprep.subr.bf16.mxu0 0
    %71 = vmatpush1.bf16.msra.mxu0 0
    %72 = vmatprep.subr.bf16.mxu0 0
    %73 = vmatpush1.bf16.msra.mxu0 0
    %74 = vmatprep.subr.bf16.mxu0 0
    %75 = vmatpush1.bf16.msra.mxu0 0
    %76 = vmatprep.subr.bf16.mxu0 0
    %77 = vmatpush1.bf16.msra.mxu0 0
    %78 = vmatprep.subr.bf16.mxu0 0
    %79 = vmatpush1.bf16.msra.mxu0 0
    %80 = vmatprep.subr.bf16.mxu0 0
    %81 = vmatpush1.bf16.msra.mxu0 0
    %82 = vmatprep.subr.bf16.mxu0 0
    %83 = vmatpush1.bf16.msra.mxu0 0
    %84 = vmatprep.subr.bf16.mxu0 0
    %85 = vmatpush1.bf16.msra.mxu0 0
    %86 = vmatprep.subr.bf16.mxu0 0
    %87 = vmatpush1.bf16.msra.mxu0 0
    %88 = vmatprep.subr.bf16.mxu0 0
    %89 = vmatpush1.bf16.msra.mxu0 0
    %90 = vmatprep.subr.bf16.mxu0 0
    %91 = vmatpush1.bf16.msra.mxu0 0
    %92 = vmatprep.subr.bf16.mxu0 0
    %93 = vmatpush1.bf16.msra.mxu0 0
    %94 = vmatprep.subr.bf16.mxu0 0
    %95 = vmatpush1.bf16.msra.mxu0 0
    %96 = vmatprep.subr.bf16.mxu0 0
    %97 = vmatpush1.bf16.msra.mxu0 0
    %98 = vmatprep.mubr.bf16.mxu0 0
    %99 = vmatmul.mubr.bf16.gmra.mrb[0].mxu0 %v64
    %v100 = vpop.f32.mrb[0].mxu0
    %v101 = vadd.f32 %v60, %v100
    %v102 = vpop.f32.mrb[0].mxu0
    %v103 = vadd.f32 %v60, %v102
    %v104 = vpop.f32.mrb[0].mxu0
    %v105 = vpop.f32.mrb[0].mxu0
    %106 = vdwg.mxu0
    %107 = vmatprep.subr.bf16.mxu0 %v51
    %108 = vmatpush1.bf16.msra.mxu0 %v50
    %109 = vmatprep.subr.bf16.mxu0 %v55
    %110 = vmatpush1.bf16.msra.mxu0 %v54
    %111 = vmatprep.subr.bf16.mxu0 0
    %112 = vmatpush1.bf16.msra.mxu0 0
    %113 = vmatprep.subr.bf16.mxu0 0
    %114 = vmatpush1.bf16.msra.mxu0 0
    %115 = vmatprep.subr.bf16.mxu0 0
    %116 = vmatpush1.bf16.msra.mxu0 0
    %117 = vmatprep.subr.bf16.mxu0 0
    %118 = vmatpush1.bf16.msra.mxu0 0
    %119 = vmatprep.subr.bf16.mxu0 0
    %120 = vmatpush1.bf16.msra.mxu0 0
    %121 = vmatprep.subr.bf16.mxu0 0
    %122 = vmatpush1.bf16.msra.mxu0 0
    %123 = vmatprep.subr.bf16.mxu0 0
    %124 = vmatpush1.bf16.msra.mxu0 0
    %125 = vmatprep.subr.bf16.mxu0 0
    %126 = vmatpush1.bf16.msra.mxu0 0
    %127 = vmatprep.subr.bf16.mxu0 0
    %128 = vmatpush1.bf16.msra.mxu0 0
    %129 = vmatprep.subr.bf16.mxu0 0
    %130 = vmatpush1.bf16.msra.mxu0 0
    %131 = vmatprep.subr.bf16.mxu0 0
    %132 = vmatpush1.bf16.msra.mxu0 0
    %133 = vmatprep.subr.bf16.mxu0 0
    %134 = vmatpush1.bf16.msra.mxu0 0
    %135 = vmatprep.subr.bf16.mxu0 0
    %136 = vmatpush1.bf16.msra.mxu0 0
    %137 = vmatprep.subr.bf16.mxu0 0
    %138 = vmatpush1.bf16.msra.mxu0 0
    %139 = vmatprep.mubr.bf16.mxu0 0
    %140 = vmatmul.mubr.bf16.gmra.mrb[0].mxu0 %v64
    %v141 = vpop.f32.mrb[0].mxu0
    %v142 = vadd.f32 %v60, %v141
    %v143 = vpop.f32.mrb[0].mxu0
    %v144 = vadd.f32 %v60, %v143
    %v145 = vpop.f32.mrb[0].mxu0
    %v146 = vpop.f32.mrb[0].mxu0
    %147 = vdwg.mxu0
    %v148 = vmax.f32 %v101, 0.0
    %v149 = vmax.f32 %v103, 0.0
    %v150 = vmax.f32 %v142, 0.0
    %v151 = vmax.f32 %v144, 0.0
    %152 = vrot.lane.b32.xlu0 %v148, 17
    %v153 = vpop.permute.xlu0 %152
    %154 = vrot.lane.b32.xlu0 %v149, 17
    %v155 = vpop.permute.xlu0 %154
    %156 = vrot.lane.b32.xlu0 %v150, 17
    %v157 = vpop.permute.xlu0 %156
    %158 = vrot.lane.b32.xlu0 %v151, 17
    %v159 = vpop.permute.xlu0 %158
    %v160 = vlaneseq
    %v161 = vand.u32 %v160, 127
    %vm162 = vcmp.lt.s32.totalorder %v161, 17
    %v163 = vsel %vm162, %v157, %v159
    %v164 = vsel %vm162, %v155, %v157
    %v165 = vsel %vm162, %v153, %v155
    %v166 = vsel %vm162, %v159, %v153
    %v167 = vpack.c.bf16 %v166, %v166
    %v168 = vpack.c.bf16 %v165, %v165
    %v169 = vpack.c.bf16 %v164, %v164
    %v170 = vpack.c.bf16 %v163, %v163
    %v171 = vld [vmem:[%s1] sm:$0xf]
    %v174 = vunpack.c.l.s4 1966171168
    %v175 = vunpack.c.0.s8 %v174
    %v176 = vlaneseq
    %v177 = vshrl.u32 %v176, 7
    %v178 = vsub.s32 %v175, %v177
    %v179 = vrot.slane %v171, %v178
    %v180 = vcombine.high %v179, %v179
    %v182 = vunpack.c.l.s4 1966171168
    %v183 = vunpack.c.0.s8 %v182
    %v184 = vlaneseq
    %v185 = vshrl.u32 %v184, 7
    %v186 = vsub.s32 %v183, %v185
    %v187 = vrot.slane %v179, %v186
    %v189 = vunpack.c.l.s4 1966171168
    %v190 = vunpack.c.0.s8 %v189
    %v191 = vlaneseq
    %v192 = vshrl.u32 %v191, 7
    %v193 = vsub.s32 %v190, %v192
    %v194 = vrot.slane %v180, %v193
    %v195 = vcombine.high %v187, %v187
    %v196 = vcombine.high %v194, %v194
    %v198 = vpack.i.b16 %v187, %v187
    %v200 = vlaneseq
    %v201 = vshrl.u32 %v200, 7
    %v202 = vsub.s32 0, %v201
    %v203 = vrot.slane %v198, %v202
    %v205 = vpack.i.b16 %v194, %v194
    %v207 = vlaneseq
    %v208 = vshrl.u32 %v207, 7
    %v209 = vsub.s32 0, %v208
    %v210 = vrot.slane %v205, %v209
    %v212 = vpack.i.b16 %v195, %v195
    %v214 = vlaneseq
    %v215 = vshrl.u32 %v214, 7
    %v216 = vsub.s32 0, %v215
    %v217 = vrot.slane %v212, %v216
    %v219 = vpack.i.b16 %v196, %v196
    %v221 = vlaneseq
    %v222 = vshrl.u32 %v221, 7
    %v223 = vsub.s32 0, %v222
    %v224 = vrot.slane %v219, %v223
    %v225 = vmul.bf16 %v167, %v203
    %v226 = vmul.bf16 %v168, %v210
    %v227 = vmul.bf16 %v169, %v217
    %v228 = vmul.bf16 %v170, %v224
    %v229 = vld [vmem:[%s4] sm:$0xf]
    %230 = vrot.lane.b32.xlu0 %v148, 16
    %v231 = vpop.permute.xlu0 %230
    %232 = vrot.lane.b32.xlu0 %v149, 16
    %v233 = vpop.permute.xlu0 %232
    %234 = vrot.lane.b32.xlu0 %v150, 16
    %v235 = vpop.permute.xlu0 %234
    %236 = vrot.lane.b32.xlu0 %v151, 16
    %v237 = vpop.permute.xlu0 %236
    %vm238 = vcmp.lt.s32.totalorder %v161, 16
    %v239 = vsel %vm238, %v235, %v237
    %v240 = vsel %vm238, %v233, %v235
    %v241 = vsel %vm238, %v231, %v233
    %v242 = vsel %vm238, %v237, %v231
    %v243 = vpack.c.bf16 %v242, %v242
    %v244 = vpack.c.bf16 %v241, %v241
    %v245 = vpack.c.bf16 %v240, %v240
    %v246 = vpack.c.bf16 %v239, %v239
    %s247 = scalar_lea.vmem %s1, 4
    %v248 = vld [vmem:[%s247] sm:$0xf]
    %v251 = vunpack.c.l.s4 1966171168
    %v252 = vunpack.c.0.s8 %v251
    %v253 = vlaneseq
    %v254 = vshrl.u32 %v253, 7
    %v255 = vsub.s32 %v252, %v254
    %v256 = vrot.slane %v248, %v255
    %v257 = vcombine.high %v256, %v256
    %v259 = vunpack.c.l.s4 1966171168
    %v260 = vunpack.c.0.s8 %v259
    %v261 = vlaneseq
    %v262 = vshrl.u32 %v261, 7
    %v263 = vsub.s32 %v260, %v262
    %v264 = vrot.slane %v256, %v263
    %v266 = vunpack.c.l.s4 1966171168
    %v267 = vunpack.c.0.s8 %v266
    %v268 = vlaneseq
    %v269 = vshrl.u32 %v268, 7
    %v270 = vsub.s32 %v267, %v269
    %v271 = vrot.slane %v257, %v270
    %v272 = vcombine.high %v264, %v264
    %v273 = vcombine.high %v271, %v271
    %v275 = vpack.i.b16 %v264, %v264
    %v277 = vlaneseq
    %v278 = vshrl.u32 %v277, 7
    %v279 = vsub.s32 0, %v278
    %v280 = vrot.slane %v275, %v279
    %v282 = vpack.i.b16 %v271, %v271
    %v284 = vlaneseq
    %v285 = vshrl.u32 %v284, 7
    %v286 = vsub.s32 0, %v285
    %v287 = vrot.slane %v282, %v286
    %v289 = vpack.i.b16 %v272, %v272
    %v291 = vlaneseq
    %v292 = vshrl.u32 %v291, 7
    %v293 = vsub.s32 0, %v292
    %v294 = vrot.slane %v289, %v293
    %v296 = vpack.i.b16 %v273, %v273
    %v298 = vlaneseq
    %v299 = vshrl.u32 %v298, 7
    %v300 = vsub.s32 0, %v299
    %v301 = vrot.slane %v296, %v300
    %v302 = vmul.bf16 %v243, %v280
    %v303 = vmul.bf16 %v244, %v287
    %v304 = vmul.bf16 %v245, %v294
    %v305 = vmul.bf16 %v246, %v301
    %s306 = scalar_lea.vmem %s4, 4
    %v307 = vld [vmem:[%s306] sm:$0xf]
    %vm308 = vcmask 64512
    %v310 = vsel %vm308, %v307, 0
    %vm312 = vcmask 1043456
    %v314 = vsel %vm312, %v302, 0
    %v317 = vsel %vm312, %v303, 0
    %v320 = vsel %vm312, %v304, 0
    %v323 = vsel %vm312, %v305, 0
    %325 = vmatprep.subr.bf16.mxu0 %v317
    %326 = vmatpush1.bf16.msra.mxu0 %v314
    %327 = vmatprep.subr.bf16.mxu0 0
    %328 = vmatpush1.bf16.msra.mxu0 0
    %329 = vmatprep.subr.bf16.mxu0 0
    %330 = vmatpush1.bf16.msra.mxu0 0
    %331 = vmatprep.subr.bf16.mxu0 0
    %332 = vmatpush1.bf16.msra.mxu0 0
    %333 = vmatprep.subr.bf16.mxu0 0
    %334 = vmatpush1.bf16.msra.mxu0 0
    %335 = vmatprep.subr.bf16.mxu0 0
    %336 = vmatpush1.bf16.msra.mxu0 0
    %337 = vmatprep.subr.bf16.mxu0 0
    %338 = vmatpush1.bf16.msra.mxu0 0
    %339 = vmatprep.subr.bf16.mxu0 0
    %340 = vmatpush1.bf16.msra.mxu0 0
    %341 = vmatprep.subr.bf16.mxu0 0
    %342 = vmatpush1.bf16.msra.mxu0 0
    %343 = vmatprep.subr.bf16.mxu0 0
    %344 = vmatpush1.bf16.msra.mxu0 0
    %345 = vmatprep.subr.bf16.mxu0 0
    %346 = vmatpush1.bf16.msra.mxu0 0
    %347 = vmatprep.subr.bf16.mxu0 0
    %348 = vmatpush1.bf16.msra.mxu0 0
    %349 = vmatprep.subr.bf16.mxu0 0
    %350 = vmatpush1.bf16.msra.mxu0 0
    %351 = vmatprep.subr.bf16.mxu0 0
    %352 = vmatpush1.bf16.msra.mxu0 0
    %353 = vmatprep.subr.bf16.mxu0 0
    %354 = vmatpush1.bf16.msra.mxu0 0
    %355 = vmatprep.subr.bf16.mxu0 0
    %356 = vmatpush1.bf16.msra.mxu0 0
    %357 = vmatprep.mubr.bf16.mxu0 0
    %358 = vmatmul.mubr.bf16.gmra.mrb[0].mxu0 %v310
    %v359 = vpop.f32.mrb[0].mxu0
    %v360 = vadd.f32 0.0, %v359
    %v361 = vpop.f32.mrb[0].mxu0
    %v362 = vadd.f32 0.0, %v361
    %v363 = vpop.f32.mrb[0].mxu0
    %v364 = vpop.f32.mrb[0].mxu0
    %365 = vdwg.mxu0
    %366 = vmatprep.subr.bf16.mxu0 %v323
    %367 = vmatpush1.bf16.msra.mxu0 %v320
    %368 = vmatprep.subr.bf16.mxu0 0
    %369 = vmatpush1.bf16.msra.mxu0 0
    %370 = vmatprep.subr.bf16.mxu0 0
    %371 = vmatpush1.bf16.msra.mxu0 0
    %372 = vmatprep.subr.bf16.mxu0 0
    %373 = vmatpush1.bf16.msra.mxu0 0
    %374 = vmatprep.subr.bf16.mxu0 0
    %375 = vmatpush1.bf16.msra.mxu0 0
    %376 = vmatprep.subr.bf16.mxu0 0
    %377 = vmatpush1.bf16.msra.mxu0 0
    %378 = vmatprep.subr.bf16.mxu0 0
    %379 = vmatpush1.bf16.msra.mxu0 0
    %380 = vmatprep.subr.bf16.mxu0 0
    %381 = vmatpush1.bf16.msra.mxu0 0
    %382 = vmatprep.subr.bf16.mxu0 0
    %383 = vmatpush1.bf16.msra.mxu0 0
    %384 = vmatprep.subr.bf16.mxu0 0
    %385 = vmatpush1.bf16.msra.mxu0 0
    %386 = vmatprep.subr.bf16.mxu0 0
    %387 = vmatpush1.bf16.msra.mxu0 0
    %388 = vmatprep.subr.bf16.mxu0 0
    %389 = vmatpush1.bf16.msra.mxu0 0
    %390 = vmatprep.subr.bf16.mxu0 0
    %391 = vmatpush1.bf16.msra.mxu0 0
    %392 = vmatprep.subr.bf16.mxu0 0
    %393 = vmatpush1.bf16.msra.mxu0 0
    %394 = vmatprep.subr.bf16.mxu0 0
    %395 = vmatpush1.bf16.msra.mxu0 0
    %396 = vmatprep.subr.bf16.mxu0 0
    %397 = vmatpush1.bf16.msra.mxu0 0
    %398 = vmatprep.mubr.bf16.mxu0 0
    %399 = vmatmul.mubr.bf16.gmra.mrb[0].mxu0 %v310
    %v400 = vpop.f32.mrb[0].mxu0
    %v401 = vadd.f32 0.0, %v400
    %v402 = vpop.f32.mrb[0].mxu0
    %v403 = vadd.f32 0.0, %v402
    %v404 = vpop.f32.mrb[0].mxu0
    %v405 = vpop.f32.mrb[0].mxu0
    %406 = vdwg.mxu0
    %v408 = vsel %vm308, %v229, 0
    %v411 = vsel %vm312, %v225, 0
    %v414 = vsel %vm312, %v226, 0
    %v417 = vsel %vm312, %v227, 0
    %v420 = vsel %vm312, %v228, 0
    %422 = vmatprep.subr.bf16.mxu0 %v414
    %423 = vmatpush1.bf16.msra.mxu0 %v411
    %424 = vmatprep.subr.bf16.mxu0 0
    %425 = vmatpush1.bf16.msra.mxu0 0
    %426 = vmatprep.subr.bf16.mxu0 0
    %427 = vmatpush1.bf16.msra.mxu0 0
    %428 = vmatprep.subr.bf16.mxu0 0
    %429 = vmatpush1.bf16.msra.mxu0 0
    %430 = vmatprep.subr.bf16.mxu0 0
    %431 = vmatpush1.bf16.msra.mxu0 0
    %432 = vmatprep.subr.bf16.mxu0 0
    %433 = vmatpush1.bf16.msra.mxu0 0
    %434 = vmatprep.subr.bf16.mxu0 0
    %435 = vmatpush1.bf16.msra.mxu0 0
    %436 = vmatprep.subr.bf16.mxu0 0
    %437 = vmatpush1.bf16.msra.mxu0 0
    %438 = vmatprep.subr.bf16.mxu0 0
    %439 = vmatpush1.bf16.msra.mxu0 0
    %440 = vmatprep.subr.bf16.mxu0 0
    %441 = vmatpush1.bf16.msra.mxu0 0
    %442 = vmatprep.subr.bf16.mxu0 0
    %443 = vmatpush1.bf16.msra.mxu0 0
    %444 = vmatprep.subr.bf16.mxu0 0
    %445 = vmatpush1.bf16.msra.mxu0 0
    %446 = vmatprep.subr.bf16.mxu0 0
    %447 = vmatpush1.bf16.msra.mxu0 0
    %448 = vmatprep.subr.bf16.mxu0 0
    %449 = vmatpush1.bf16.msra.mxu0 0
    %450 = vmatprep.subr.bf16.mxu0 0
    %451 = vmatpush1.bf16.msra.mxu0 0
    %452 = vmatprep.subr.bf16.mxu0 0
    %453 = vmatpush1.bf16.msra.mxu0 0
    %454 = vmatprep.mubr.bf16.mxu0 0
    %455 = vmatmul.mubr.bf16.gmra.mrb[0].mxu0 %v408
    %v456 = vpop.f32.mrb[0].mxu0
    %v457 = vadd.f32 %v360, %v456
    %v458 = vpop.f32.mrb[0].mxu0
    %v459 = vadd.f32 %v362, %v458
    %v460 = vpop.f32.mrb[0].mxu0
    %v461 = vpop.f32.mrb[0].mxu0
    %462 = vdwg.mxu0
    %463 = vmatprep.subr.bf16.mxu0 %v420
    %464 = vmatpush1.bf16.msra.mxu0 %v417
    %465 = vmatprep.subr.bf16.mxu0 0
    %466 = vmatpush1.bf16.msra.mxu0 0
    %467 = vmatprep.subr.bf16.mxu0 0
    %468 = vmatpush1.bf16.msra.mxu0 0
    %469 = vmatprep.subr.bf16.mxu0 0
    %470 = vmatpush1.bf16.msra.mxu0 0
    %471 = vmatprep.subr.bf16.mxu0 0
    %472 = vmatpush1.bf16.msra.mxu0 0
    %473 = vmatprep.subr.bf16.mxu0 0
    %474 = vmatpush1.bf16.msra.mxu0 0
    %475 = vmatprep.subr.bf16.mxu0 0
    %476 = vmatpush1.bf16.msra.mxu0 0
    %477 = vmatprep.subr.bf16.mxu0 0
    %478 = vmatpush1.bf16.msra.mxu0 0
    %479 = vmatprep.subr.bf16.mxu0 0
    %480 = vmatpush1.bf16.msra.mxu0 0
    %481 = vmatprep.subr.bf16.mxu0 0
    %482 = vmatpush1.bf16.msra.mxu0 0
    %483 = vmatprep.subr.bf16.mxu0 0
    %484 = vmatpush1.bf16.msra.mxu0 0
    %485 = vmatprep.subr.bf16.mxu0 0
    %486 = vmatpush1.bf16.msra.mxu0 0
    %487 = vmatprep.subr.bf16.mxu0 0
    %488 = vmatpush1.bf16.msra.mxu0 0
    %489 = vmatprep.subr.bf16.mxu0 0
    %490 = vmatpush1.bf16.msra.mxu0 0
    %491 = vmatprep.subr.bf16.mxu0 0
    %492 = vmatpush1.bf16.msra.mxu0 0
    %493 = vmatprep.subr.bf16.mxu0 0
    %494 = vmatpush1.bf16.msra.mxu0 0
    %495 = vmatprep.mubr.bf16.mxu0 0
    %496 = vmatmul.mubr.bf16.gmra.mrb[0].mxu0 %v408
    %v497 = vpop.f32.mrb[0].mxu0
    %v498 = vadd.f32 %v401, %v497
    %v499 = vpop.f32.mrb[0].mxu0
    %v500 = vadd.f32 %v403, %v499
    %v501 = vpop.f32.mrb[0].mxu0
    %v502 = vpop.f32.mrb[0].mxu0
    %503 = vdwg.mxu0
    %504 = vrot.lane.b32.xlu0 %v148, 15
    %v505 = vpop.permute.xlu0 %504
    %506 = vrot.lane.b32.xlu0 %v149, 15
    %v507 = vpop.permute.xlu0 %506
    %508 = vrot.lane.b32.xlu0 %v150, 15
    %v509 = vpop.permute.xlu0 %508
    %510 = vrot.lane.b32.xlu0 %v151, 15
    %v511 = vpop.permute.xlu0 %510
    %vm512 = vcmp.lt.s32.totalorder %v161, 15
    %v513 = vsel %vm512, %v509, %v511
    %v514 = vsel %vm512, %v507, %v509
    %v515 = vsel %vm512, %v505, %v507
    %v516 = vsel %vm512, %v511, %v505
    %v517 = vpack.c.bf16 %v516, %v516
    %v518 = vpack.c.bf16 %v515, %v515
    %v519 = vpack.c.bf16 %v514, %v514
    %v520 = vpack.c.bf16 %v513, %v513
    %s521 = scalar_lea.vmem %s1, 8
    %v522 = vld [vmem:[%s521] sm:$0xf]
    %v525 = vunpack.c.l.s4 1966171168
    %v526 = vunpack.c.0.s8 %v525
    %v527 = vlaneseq
    %v528 = vshrl.u32 %v527, 7
    %v529 = vsub.s32 %v526, %v528
    %v530 = vrot.slane %v522, %v529
    %v531 = vcombine.high %v530, %v530
    %v533 = vunpack.c.l.s4 1966171168
    %v534 = vunpack.c.0.s8 %v533
    %v535 = vlaneseq
    %v536 = vshrl.u32 %v535, 7
    %v537 = vsub.s32 %v534, %v536
    %v538 = vrot.slane %v530, %v537
    %v540 = vunpack.c.l.s4 1966171168
    %v541 = vunpack.c.0.s8 %v540
    %v542 = vlaneseq
    %v543 = vshrl.u32 %v542, 7
    %v544 = vsub.s32 %v541, %v543
    %v545 = vrot.slane %v531, %v544
    %v546 = vcombine.high %v538, %v538
    %v547 = vcombine.high %v545, %v545
    %v549 = vpack.i.b16 %v538, %v538
    %v551 = vlaneseq
    %v552 = vshrl.u32 %v551, 7
    %v553 = vsub.s32 0, %v552
    %v554 = vrot.slane %v549, %v553
    %v556 = vpack.i.b16 %v545, %v545
    %v558 = vlaneseq
    %v559 = vshrl.u32 %v558, 7
    %v560 = vsub.s32 0, %v559
    %v561 = vrot.slane %v556, %v560
    %v563 = vpack.i.b16 %v546, %v546
    %v565 = vlaneseq
    %v566 = vshrl.u32 %v565, 7
    %v567 = vsub.s32 0, %v566
    %v568 = vrot.slane %v563, %v567
    %v570 = vpack.i.b16 %v547, %v547
    %v572 = vlaneseq
    %v573 = vshrl.u32 %v572, 7
    %v574 = vsub.s32 0, %v573
    %v575 = vrot.slane %v570, %v574
    %v576 = vmul.bf16 %v517, %v554
    %v577 = vmul.bf16 %v518, %v561
    %v578 = vmul.bf16 %v519, %v568
    %v579 = vmul.bf16 %v520, %v575
    %s580 = scalar_lea.vmem %s4, 8
    %v581 = vld [vmem:[%s580] sm:$0xf]
    %v583 = vsel %vm308, %v581, 0
    %v586 = vsel %vm312, %v576, 0
    %v589 = vsel %vm312, %v577, 0
    %v592 = vsel %vm312, %v578, 0
    %v595 = vsel %vm312, %v579, 0
    %597 = vmatprep.subr.bf16.mxu0 %v589
    %598 = vmatpush1.bf16.msra.mxu0 %v586
    %599 = vmatprep.subr.bf16.mxu0 0
    %600 = vmatpush1.bf16.msra.mxu0 0
    %601 = vmatprep.subr.bf16.mxu0 0
    %602 = vmatpush1.bf16.msra.mxu0 0
    %603 = vmatprep.subr.bf16.mxu0 0
    %604 = vmatpush1.bf16.msra.mxu0 0
    %605 = vmatprep.subr.bf16.mxu0 0
    %606 = vmatpush1.bf16.msra.mxu0 0
    %607 = vmatprep.subr.bf16.mxu0 0
    %608 = vmatpush1.bf16.msra.mxu0 0
    %609 = vmatprep.subr.bf16.mxu0 0
    %610 = vmatpush1.bf16.msra.mxu0 0
    %611 = vmatprep.subr.bf16.mxu0 0
    %612 = vmatpush1.bf16.msra.mxu0 0
    %613 = vmatprep.subr.bf16.mxu0 0
    %614 = vmatpush1.bf16.msra.mxu0 0
    %615 = vmatprep.subr.bf16.mxu0 0
    %616 = vmatpush1.bf16.msra.mxu0 0
    %617 = vmatprep.subr.bf16.mxu0 0
    %618 = vmatpush1.bf16.msra.mxu0 0
    %619 = vmatprep.subr.bf16.mxu0 0
    %620 = vmatpush1.bf16.msra.mxu0 0
    %621 = vmatprep.subr.bf16.mxu0 0
    %622 = vmatpush1.bf16.msra.mxu0 0
    %623 = vmatprep.subr.bf16.mxu0 0
    %624 = vmatpush1.bf16.msra.mxu0 0
    %625 = vmatprep.subr.bf16.mxu0 0
    %626 = vmatpush1.bf16.msra.mxu0 0
    %627 = vmatprep.subr.bf16.mxu0 0
    %628 = vmatpush1.bf16.msra.mxu0 0
    %629 = vmatprep.mubr.bf16.mxu0 0
    %630 = vmatmul.mubr.bf16.gmra.mrb[0].mxu0 %v583
    %v631 = vpop.f32.mrb[0].mxu0
    %v632 = vadd.f32 0.0, %v631
    %v633 = vpop.f32.mrb[0].mxu0
    %v634 = vadd.f32 0.0, %v633
    %v635 = vpop.f32.mrb[0].mxu0
    %v636 = vpop.f32.mrb[0].mxu0
    %637 = vdwg.mxu0
    %638 = vmatprep.subr.bf16.mxu0 %v595
    %639 = vmatpush1.bf16.msra.mxu0 %v592
    %640 = vmatprep.subr.bf16.mxu0 0
    %641 = vmatpush1.bf16.msra.mxu0 0
    %642 = vmatprep.subr.bf16.mxu0 0
    %643 = vmatpush1.bf16.msra.mxu0 0
    %644 = vmatprep.subr.bf16.mxu0 0
    %645 = vmatpush1.bf16.msra.mxu0 0
    %646 = vmatprep.subr.bf16.mxu0 0
    %647 = vmatpush1.bf16.msra.mxu0 0
    %648 = vmatprep.subr.bf16.mxu0 0
    %649 = vmatpush1.bf16.msra.mxu0 0
    %650 = vmatprep.subr.bf16.mxu0 0
    %651 = vmatpush1.bf16.msra.mxu0 0
    %652 = vmatprep.subr.bf16.mxu0 0
    %653 = vmatpush1.bf16.msra.mxu0 0
    %654 = vmatprep.subr.bf16.mxu0 0
    %655 = vmatpush1.bf16.msra.mxu0 0
    %656 = vmatprep.subr.bf16.mxu0 0
    %657 = vmatpush1.bf16.msra.mxu0 0
    %658 = vmatprep.subr.bf16.mxu0 0
    %659 = vmatpush1.bf16.msra.mxu0 0
    %660 = vmatprep.subr.bf16.mxu0 0
    %661 = vmatpush1.bf16.msra.mxu0 0
    %662 = vmatprep.subr.bf16.mxu0 0
    %663 = vmatpush1.bf16.msra.mxu0 0
    %664 = vmatprep.subr.bf16.mxu0 0
    %665 = vmatpush1.bf16.msra.mxu0 0
    %666 = vmatprep.subr.bf16.mxu0 0
    %667 = vmatpush1.bf16.msra.mxu0 0
    %668 = vmatprep.subr.bf16.mxu0 0
    %669 = vmatpush1.bf16.msra.mxu0 0
    %670 = vmatprep.mubr.bf16.mxu0 0
    %671 = vmatmul.mubr.bf16.gmra.mrb[0].mxu0 %v583
    %v672 = vpop.f32.mrb[0].mxu0
    %v673 = vadd.f32 0.0, %v672
    %v674 = vpop.f32.mrb[0].mxu0
    %v675 = vadd.f32 0.0, %v674
    %v676 = vpop.f32.mrb[0].mxu0
    %v677 = vpop.f32.mrb[0].mxu0
    %678 = vdwg.mxu0
    %v679 = vadd.f32 %v457, %v632
    %v680 = vadd.f32 %v459, %v634
    %v681 = vadd.f32 %v498, %v673
    %v682 = vadd.f32 %v500, %v675
    %683 = vrot.lane.b32.xlu0 %v148, 1
    %v684 = vpop.permute.xlu0 %683
    %685 = vrot.lane.b32.xlu0 %v149, 1
    %v686 = vpop.permute.xlu0 %685
    %687 = vrot.lane.b32.xlu0 %v150, 1
    %v688 = vpop.permute.xlu0 %687
    %689 = vrot.lane.b32.xlu0 %v151, 1
    %v690 = vpop.permute.xlu0 %689
    %vm691 = vcmp.lt.s32.totalorder %v161, 1
    %v692 = vsel %vm691, %v688, %v690
    %v693 = vsel %vm691, %v686, %v688
    %v694 = vsel %vm691, %v684, %v686
    %v695 = vsel %vm691, %v690, %v684
    %v696 = vpack.c.bf16 %v695, %v695
    %v697 = vpack.c.bf16 %v694, %v694
    %v698 = vpack.c.bf16 %v693, %v693
    %v699 = vpack.c.bf16 %v692, %v692
    %s700 = scalar_lea.vmem %s1, 12
    %v701 = vld [vmem:[%s700] sm:$0xf]
    %v704 = vunpack.c.l.s4 1966171168
    %v705 = vunpack.c.0.s8 %v704
    %v706 = vlaneseq
    %v707 = vshrl.u32 %v706, 7
    %v708 = vsub.s32 %v705, %v707
    %v709 = vrot.slane %v701, %v708
    %v710 = vcombine.high %v709, %v709
    %v712 = vunpack.c.l.s4 1966171168
    %v713 = vunpack.c.0.s8 %v712
    %v714 = vlaneseq
    %v715 = vshrl.u32 %v714, 7
    %v716 = vsub.s32 %v713, %v715
    %v717 = vrot.slane %v709, %v716
    %v719 = vunpack.c.l.s4 1966171168
    %v720 = vunpack.c.0.s8 %v719
    %v721 = vlaneseq
    %v722 = vshrl.u32 %v721, 7
    %v723 = vsub.s32 %v720, %v722
    %v724 = vrot.slane %v710, %v723
    %v725 = vcombine.high %v717, %v717
    %v726 = vcombine.high %v724, %v724
    %v728 = vpack.i.b16 %v717, %v717
    %v730 = vlaneseq
    %v731 = vshrl.u32 %v730, 7
    %v732 = vsub.s32 0, %v731
    %v733 = vrot.slane %v728, %v732
    %v735 = vpack.i.b16 %v724, %v724
    %v737 = vlaneseq
    %v738 = vshrl.u32 %v737, 7
    %v739 = vsub.s32 0, %v738
    %v740 = vrot.slane %v735, %v739
    %v742 = vpack.i.b16 %v725, %v725
    %v744 = vlaneseq
    %v745 = vshrl.u32 %v744, 7
    %v746 = vsub.s32 0, %v745
    %v747 = vrot.slane %v742, %v746
    %v749 = vpack.i.b16 %v726, %v726
    %v751 = vlaneseq
    %v752 = vshrl.u32 %v751, 7
    %v753 = vsub.s32 0, %v752
    %v754 = vrot.slane %v749, %v753
    %v755 = vmul.bf16 %v696, %v733
    %v756 = vmul.bf16 %v697, %v740
    %v757 = vmul.bf16 %v698, %v747
    %v758 = vmul.bf16 %v699, %v754
    %s759 = scalar_lea.vmem %s4, 12
    %v760 = vld [vmem:[%s759] sm:$0xf]
    %v762 = vsel %vm308, %v760, 0
    %v765 = vsel %vm312, %v755, 0
    %v768 = vsel %vm312, %v756, 0
    %v771 = vsel %vm312, %v757, 0
    %v774 = vsel %vm312, %v758, 0
    %776 = vmatprep.subr.bf16.mxu0 %v768
    %777 = vmatpush1.bf16.msra.mxu0 %v765
    %778 = vmatprep.subr.bf16.mxu0 0
    %779 = vmatpush1.bf16.msra.mxu0 0
    %780 = vmatprep.subr.bf16.mxu0 0
    %781 = vmatpush1.bf16.msra.mxu0 0
    %782 = vmatprep.subr.bf16.mxu0 0
    %783 = vmatpush1.bf16.msra.mxu0 0
    %784 = vmatprep.subr.bf16.mxu0 0
    %785 = vmatpush1.bf16.msra.mxu0 0
    %786 = vmatprep.subr.bf16.mxu0 0
    %787 = vmatpush1.bf16.msra.mxu0 0
    %788 = vmatprep.subr.bf16.mxu0 0
    %789 = vmatpush1.bf16.msra.mxu0 0
    %790 = vmatprep.subr.bf16.mxu0 0
    %791 = vmatpush1.bf16.msra.mxu0 0
    %792 = vmatprep.subr.bf16.mxu0 0
    %793 = vmatpush1.bf16.msra.mxu0 0
    %794 = vmatprep.subr.bf16.mxu0 0
    %795 = vmatpush1.bf16.msra.mxu0 0
    %796 = vmatprep.subr.bf16.mxu0 0
    %797 = vmatpush1.bf16.msra.mxu0 0
    %798 = vmatprep.subr.bf16.mxu0 0
    %799 = vmatpush1.bf16.msra.mxu0 0
    %800 = vmatprep.subr.bf16.mxu0 0
    %801 = vmatpush1.bf16.msra.mxu0 0
    %802 = vmatprep.subr.bf16.mxu0 0
    %803 = vmatpush1.bf16.msra.mxu0 0
    %804 = vmatprep.subr.bf16.mxu0 0
    %805 = vmatpush1.bf16.msra.mxu0 0
    %806 = vmatprep.subr.bf16.mxu0 0
    %807 = vmatpush1.bf16.msra.mxu0 0
    %808 = vmatprep.mubr.bf16.mxu0 0
    %809 = vmatmul.mubr.bf16.gmra.mrb[0].mxu0 %v762
    %v810 = vpop.f32.mrb[0].mxu0
    %v811 = vadd.f32 0.0, %v810
    %v812 = vpop.f32.mrb[0].mxu0
    %v813 = vadd.f32 0.0, %v812
    %v814 = vpop.f32.mrb[0].mxu0
    %v815 = vpop.f32.mrb[0].mxu0
    %816 = vdwg.mxu0
    %817 = vmatprep.subr.bf16.mxu0 %v774
    %818 = vmatpush1.bf16.msra.mxu0 %v771
    %819 = vmatprep.subr.bf16.mxu0 0
    %820 = vmatpush1.bf16.msra.mxu0 0
    %821 = vmatprep.subr.bf16.mxu0 0
    %822 = vmatpush1.bf16.msra.mxu0 0
    %823 = vmatprep.subr.bf16.mxu0 0
    %824 = vmatpush1.bf16.msra.mxu0 0
    %825 = vmatprep.subr.bf16.mxu0 0
    %826 = vmatpush1.bf16.msra.mxu0 0
    %827 = vmatprep.subr.bf16.mxu0 0
    %828 = vmatpush1.bf16.msra.mxu0 0
    %829 = vmatprep.subr.bf16.mxu0 0
    %830 = vmatpush1.bf16.msra.mxu0 0
    %831 = vmatprep.subr.bf16.mxu0 0
    %832 = vmatpush1.bf16.msra.mxu0 0
    %833 = vmatprep.subr.bf16.mxu0 0
    %834 = vmatpush1.bf16.msra.mxu0 0
    %835 = vmatprep.subr.bf16.mxu0 0
    %836 = vmatpush1.bf16.msra.mxu0 0
    %837 = vmatprep.subr.bf16.mxu0 0
    %838 = vmatpush1.bf16.msra.mxu0 0
    %839 = vmatprep.subr.bf16.mxu0 0
    %840 = vmatpush1.bf16.msra.mxu0 0
    %841 = vmatprep.subr.bf16.mxu0 0
    %842 = vmatpush1.bf16.msra.mxu0 0
    %843 = vmatprep.subr.bf16.mxu0 0
    %844 = vmatpush1.bf16.msra.mxu0 0
    %845 = vmatprep.subr.bf16.mxu0 0
    %846 = vmatpush1.bf16.msra.mxu0 0
    %847 = vmatprep.subr.bf16.mxu0 0
    %848 = vmatpush1.bf16.msra.mxu0 0
    %849 = vmatprep.mubr.bf16.mxu0 0
    %850 = vmatmul.mubr.bf16.gmra.mrb[0].mxu0 %v762
    %v851 = vpop.f32.mrb[0].mxu0
    %v852 = vadd.f32 0.0, %v851
    %v853 = vpop.f32.mrb[0].mxu0
    %v854 = vadd.f32 0.0, %v853
    %v855 = vpop.f32.mrb[0].mxu0
    %v856 = vpop.f32.mrb[0].mxu0
    %857 = vdwg.mxu0
    %v858 = vadd.f32 %v679, %v811
    %v859 = vadd.f32 %v680, %v813
    %v860 = vadd.f32 %v681, %v852
    %v861 = vadd.f32 %v682, %v854
    %v862 = vpack.c.bf16 %v148, %v148
    %v863 = vpack.c.bf16 %v149, %v149
    %v864 = vpack.c.bf16 %v150, %v150
    %v865 = vpack.c.bf16 %v151, %v151
    %s866 = scalar_lea.vmem %s1, 16
    %v867 = vld [vmem:[%s866] sm:$0xf]
    %v870 = vunpack.c.l.s4 1966171168
    %v871 = vunpack.c.0.s8 %v870
    %v872 = vlaneseq
    %v873 = vshrl.u32 %v872, 7
    %v874 = vsub.s32 %v871, %v873
    %v875 = vrot.slane %v867, %v874
    %v876 = vcombine.high %v875, %v875
    %v878 = vunpack.c.l.s4 1966171168
    %v879 = vunpack.c.0.s8 %v878
    %v880 = vlaneseq
    %v881 = vshrl.u32 %v880, 7
    %v882 = vsub.s32 %v879, %v881
    %v883 = vrot.slane %v875, %v882
    %v885 = vunpack.c.l.s4 1966171168
    %v886 = vunpack.c.0.s8 %v885
    %v887 = vlaneseq
    %v888 = vshrl.u32 %v887, 7
    %v889 = vsub.s32 %v886, %v888
    %v890 = vrot.slane %v876, %v889
    %v891 = vcombine.high %v883, %v883
    %v892 = vcombine.high %v890, %v890
    %v894 = vpack.i.b16 %v883, %v883
    %v896 = vlaneseq
    %v897 = vshrl.u32 %v896, 7
    %v898 = vsub.s32 0, %v897
    %v899 = vrot.slane %v894, %v898
    %v901 = vpack.i.b16 %v890, %v890
    %v903 = vlaneseq
    %v904 = vshrl.u32 %v903, 7
    %v905 = vsub.s32 0, %v904
    %v906 = vrot.slane %v901, %v905
    %v908 = vpack.i.b16 %v891, %v891
    %v910 = vlaneseq
    %v911 = vshrl.u32 %v910, 7
    %v912 = vsub.s32 0, %v911
    %v913 = vrot.slane %v908, %v912
    %v915 = vpack.i.b16 %v892, %v892
    %v917 = vlaneseq
    %v918 = vshrl.u32 %v917, 7
    %v919 = vsub.s32 0, %v918
    %v920 = vrot.slane %v915, %v919
    %v921 = vmul.bf16 %v862, %v899
    %v922 = vmul.bf16 %v863, %v906
    %v923 = vmul.bf16 %v864, %v913
    %v924 = vmul.bf16 %v865, %v920
    %s925 = scalar_lea.vmem %s4, 16
    %v926 = vld [vmem:[%s925] sm:$0xf]
    %v928 = vsel %vm308, %v926, 0
    %v931 = vsel %vm312, %v921, 0
    %v934 = vsel %vm312, %v922, 0
    %v937 = vsel %vm312, %v923, 0
    %v940 = vsel %vm312, %v924, 0
    %942 = vmatprep.subr.bf16.mxu0 %v934
    %943 = vmatpush1.bf16.msra.mxu0 %v931
    %944 = vmatprep.subr.bf16.mxu0 0
    %945 = vmatpush1.bf16.msra.mxu0 0
    %946 = vmatprep.subr.bf16.mxu0 0
    %947 = vmatpush1.bf16.msra.mxu0 0
    %948 = vmatprep.subr.bf16.mxu0 0
    %949 = vmatpush1.bf16.msra.mxu0 0
    %950 = vmatprep.subr.bf16.mxu0 0
    %951 = vmatpush1.bf16.msra.mxu0 0
    %952 = vmatprep.subr.bf16.mxu0 0
    %953 = vmatpush1.bf16.msra.mxu0 0
    %954 = vmatprep.subr.bf16.mxu0 0
    %955 = vmatpush1.bf16.msra.mxu0 0
    %956 = vmatprep.subr.bf16.mxu0 0
    %957 = vmatpush1.bf16.msra.mxu0 0
    %958 = vmatprep.subr.bf16.mxu0 0
    %959 = vmatpush1.bf16.msra.mxu0 0
    %960 = vmatprep.subr.bf16.mxu0 0
    %961 = vmatpush1.bf16.msra.mxu0 0
    %962 = vmatprep.subr.bf16.mxu0 0
    %963 = vmatpush1.bf16.msra.mxu0 0
    %964 = vmatprep.subr.bf16.mxu0 0
    %965 = vmatpush1.bf16.msra.mxu0 0
    %966 = vmatprep.subr.bf16.mxu0 0
    %967 = vmatpush1.bf16.msra.mxu0 0
    %968 = vmatprep.subr.bf16.mxu0 0
    %969 = vmatpush1.bf16.msra.mxu0 0
    %970 = vmatprep.subr.bf16.mxu0 0
    %971 = vmatpush1.bf16.msra.mxu0 0
    %972 = vmatprep.subr.bf16.mxu0 0
    %973 = vmatpush1.bf16.msra.mxu0 0
    %974 = vmatprep.mubr.bf16.mxu0 0
    %975 = vmatmul.mubr.bf16.gmra.mrb[0].mxu0 %v928
    %v976 = vpop.f32.mrb[0].mxu0
    %v977 = vadd.f32 0.0, %v976
    %v978 = vpop.f32.mrb[0].mxu0
    %v979 = vadd.f32 0.0, %v978
    %v980 = vpop.f32.mrb[0].mxu0
    %v981 = vpop.f32.mrb[0].mxu0
    %982 = vdwg.mxu0
    %983 = vmatprep.subr.bf16.mxu0 %v940
    %984 = vmatpush1.bf16.msra.mxu0 %v937
    %985 = vmatprep.subr.bf16.mxu0 0
    %986 = vmatpush1.bf16.msra.mxu0 0
    %987 = vmatprep.subr.bf16.mxu0 0
    %988 = vmatpush1.bf16.msra.mxu0 0
    %989 = vmatprep.subr.bf16.mxu0 0
    %990 = vmatpush1.bf16.msra.mxu0 0
    %991 = vmatprep.subr.bf16.mxu0 0
    %992 = vmatpush1.bf16.msra.mxu0 0
    %993 = vmatprep.subr.bf16.mxu0 0
    %994 = vmatpush1.bf16.msra.mxu0 0
    %995 = vmatprep.subr.bf16.mxu0 0
    %996 = vmatpush1.bf16.msra.mxu0 0
    %997 = vmatprep.subr.bf16.mxu0 0
    %998 = vmatpush1.bf16.msra.mxu0 0
    %999 = vmatprep.subr.bf16.mxu0 0
    %1000 = vmatpush1.bf16.msra.mxu0 0
    %1001 = vmatprep.subr.bf16.mxu0 0
    %1002 = vmatpush1.bf16.msra.mxu0 0
    %1003 = vmatprep.subr.bf16.mxu0 0
    %1004 = vmatpush1.bf16.msra.mxu0 0
    %1005 = vmatprep.subr.bf16.mxu0 0
    %1006 = vmatpush1.bf16.msra.mxu0 0
    %1007 = vmatprep.subr.bf16.mxu0 0
    %1008 = vmatpush1.bf16.msra.mxu0 0
    %1009 = vmatprep.subr.bf16.mxu0 0
    %1010 = vmatpush1.bf16.msra.mxu0 0
    %1011 = vmatprep.subr.bf16.mxu0 0
    %1012 = vmatpush1.bf16.msra.mxu0 0
    %1013 = vmatprep.subr.bf16.mxu0 0
    %1014 = vmatpush1.bf16.msra.mxu0 0
    %1015 = vmatprep.mubr.bf16.mxu0 0
    %1016 = vmatmul.mubr.bf16.gmra.mrb[0].mxu0 %v928
    %v1017 = vpop.f32.mrb[0].mxu0
    %v1018 = vadd.f32 0.0, %v1017
    %v1019 = vpop.f32.mrb[0].mxu0
    %v1020 = vadd.f32 0.0, %v1019
    %v1021 = vpop.f32.mrb[0].mxu0
    %v1022 = vpop.f32.mrb[0].mxu0
    %1023 = vdwg.mxu0
    %v1024 = vadd.f32 %v858, %v977
    %v1025 = vadd.f32 %v859, %v979
    %v1026 = vadd.f32 %v860, %v1018
    %v1027 = vadd.f32 %v861, %v1020
    %1028 = vrot.lane.b32.xlu0 %v148, 127
    %v1029 = vpop.permute.xlu0 %1028
    %1030 = vrot.lane.b32.xlu0 %v149, 127
    %v1031 = vpop.permute.xlu0 %1030
    %1032 = vrot.lane.b32.xlu0 %v150, 127
    %v1033 = vpop.permute.xlu0 %1032
    %1034 = vrot.lane.b32.xlu0 %v151, 127
    %v1035 = vpop.permute.xlu0 %1034
    %vm1036 = vcmp.lt.s32.totalorder %v161, 127
    %v1037 = vsel %vm1036, %v1033, %v1035
    %v1038 = vsel %vm1036, %v1031, %v1033
    %v1039 = vsel %vm1036, %v1029, %v1031
    %v1040 = vsel %vm1036, %v1035, %v1029
    %v1041 = vpack.c.bf16 %v1039, %v1039
    %v1042 = vpack.c.bf16 %v1038, %v1038
    %v1043 = vpack.c.bf16 %v1037, %v1037
    %v1044 = vpack.c.bf16 %v1040, %v1040
    %s1045 = scalar_lea.vmem %s1, 20
    %v1046 = vld [vmem:[%s1045] sm:$0xf]
    %v1049 = vunpack.c.l.s4 1966171168
    %v1050 = vunpack.c.0.s8 %v1049
    %v1051 = vlaneseq
    %v1052 = vshrl.u32 %v1051, 7
    %v1053 = vsub.s32 %v1050, %v1052
    %v1054 = vrot.slane %v1046, %v1053
    %v1055 = vcombine.high %v1054, %v1054
    %v1057 = vunpack.c.l.s4 1966171168
    %v1058 = vunpack.c.0.s8 %v1057
    %v1059 = vlaneseq
    %v1060 = vshrl.u32 %v1059, 7
    %v1061 = vsub.s32 %v1058, %v1060
    %v1062 = vrot.slane %v1054, %v1061
    %v1064 = vunpack.c.l.s4 1966171168
    %v1065 = vunpack.c.0.s8 %v1064
    %v1066 = vlaneseq
    %v1067 = vshrl.u32 %v1066, 7
    %v1068 = vsub.s32 %v1065, %v1067
    %v1069 = vrot.slane %v1055, %v1068
    %v1070 = vcombine.high %v1062, %v1062
    %v1071 = vcombine.high %v1069, %v1069
    %v1073 = vpack.i.b16 %v1062, %v1062
    %v1075 = vlaneseq
    %v1076 = vshrl.u32 %v1075, 7
    %v1077 = vsub.s32 0, %v1076
    %v1078 = vrot.slane %v1073, %v1077
    %v1080 = vpack.i.b16 %v1069, %v1069
    %v1082 = vlaneseq
    %v1083 = vshrl.u32 %v1082, 7
    %v1084 = vsub.s32 0, %v1083
    %v1085 = vrot.slane %v1080, %v1084
    %v1087 = vpack.i.b16 %v1070, %v1070
    %v1089 = vlaneseq
    %v1090 = vshrl.u32 %v1089, 7
    %v1091 = vsub.s32 0, %v1090
    %v1092 = vrot.slane %v1087, %v1091
    %v1094 = vpack.i.b16 %v1071, %v1071
    %v1096 = vlaneseq
    %v1097 = vshrl.u32 %v1096, 7
    %v1098 = vsub.s32 0, %v1097
    %v1099 = vrot.slane %v1094, %v1098
    %v1100 = vmul.bf16 %v1041, %v1078
    %v1101 = vmul.bf16 %v1042, %v1085
    %v1102 = vmul.bf16 %v1043, %v1092
    %v1103 = vmul.bf16 %v1044, %v1099
    %s1104 = scalar_lea.vmem %s4, 20
    %v1105 = vld [vmem:[%s1104] sm:$0xf]
    %v1107 = vsel %vm308, %v1105, 0
    %v1110 = vsel %vm312, %v1100, 0
    %v1113 = vsel %vm312, %v1101, 0
    %v1116 = vsel %vm312, %v1102, 0
    %v1119 = vsel %vm312, %v1103, 0
    %1121 = vmatprep.subr.bf16.mxu0 %v1113
    %1122 = vmatpush1.bf16.msra.mxu0 %v1110
    %1123 = vmatprep.subr.bf16.mxu0 0
    %1124 = vmatpush1.bf16.msra.mxu0 0
    %1125 = vmatprep.subr.bf16.mxu0 0
    %1126 = vmatpush1.bf16.msra.mxu0 0
    %1127 = vmatprep.subr.bf16.mxu0 0
    %1128 = vmatpush1.bf16.msra.mxu0 0
    %1129 = vmatprep.subr.bf16.mxu0 0
    %1130 = vmatpush1.bf16.msra.mxu0 0
    %1131 = vmatprep.subr.bf16.mxu0 0
    %1132 = vmatpush1.bf16.msra.mxu0 0
    %1133 = vmatprep.subr.bf16.mxu0 0
    %1134 = vmatpush1.bf16.msra.mxu0 0
    %1135 = vmatprep.subr.bf16.mxu0 0
    %1136 = vmatpush1.bf16.msra.mxu0 0
    %1137 = vmatprep.subr.bf16.mxu0 0
    %1138 = vmatpush1.bf16.msra.mxu0 0
    %1139 = vmatprep.subr.bf16.mxu0 0
    %1140 = vmatpush1.bf16.msra.mxu0 0
    %1141 = vmatprep.subr.bf16.mxu0 0
    %1142 = vmatpush1.bf16.msra.mxu0 0
    %1143 = vmatprep.subr.bf16.mxu0 0
    %1144 = vmatpush1.bf16.msra.mxu0 0
    %1145 = vmatprep.subr.bf16.mxu0 0
    %1146 = vmatpush1.bf16.msra.mxu0 0
    %1147 = vmatprep.subr.bf16.mxu0 0
    %1148 = vmatpush1.bf16.msra.mxu0 0
    %1149 = vmatprep.subr.bf16.mxu0 0
    %1150 = vmatpush1.bf16.msra.mxu0 0
    %1151 = vmatprep.subr.bf16.mxu0 0
    %1152 = vmatpush1.bf16.msra.mxu0 0
    %1153 = vmatprep.mubr.bf16.mxu0 0
    %1154 = vmatmul.mubr.bf16.gmra.mrb[0].mxu0 %v1107
    %v1155 = vpop.f32.mrb[0].mxu0
    %v1156 = vadd.f32 0.0, %v1155
    %v1157 = vpop.f32.mrb[0].mxu0
    %v1158 = vadd.f32 0.0, %v1157
    %v1159 = vpop.f32.mrb[0].mxu0
    %v1160 = vpop.f32.mrb[0].mxu0
    %1161 = vdwg.mxu0
    %1162 = vmatprep.subr.bf16.mxu0 %v1119
    %1163 = vmatpush1.bf16.msra.mxu0 %v1116
    %1164 = vmatprep.subr.bf16.mxu0 0
    %1165 = vmatpush1.bf16.msra.mxu0 0
    %1166 = vmatprep.subr.bf16.mxu0 0
    %1167 = vmatpush1.bf16.msra.mxu0 0
    %1168 = vmatprep.subr.bf16.mxu0 0
    %1169 = vmatpush1.bf16.msra.mxu0 0
    %1170 = vmatprep.subr.bf16.mxu0 0
    %1171 = vmatpush1.bf16.msra.mxu0 0
    %1172 = vmatprep.subr.bf16.mxu0 0
    %1173 = vmatpush1.bf16.msra.mxu0 0
    %1174 = vmatprep.subr.bf16.mxu0 0
    %1175 = vmatpush1.bf16.msra.mxu0 0
    %1176 = vmatprep.subr.bf16.mxu0 0
    %1177 = vmatpush1.bf16.msra.mxu0 0
    %1178 = vmatprep.subr.bf16.mxu0 0
    %1179 = vmatpush1.bf16.msra.mxu0 0
    %1180 = vmatprep.subr.bf16.mxu0 0
    %1181 = vmatpush1.bf16.msra.mxu0 0
    %1182 = vmatprep.subr.bf16.mxu0 0
    %1183 = vmatpush1.bf16.msra.mxu0 0
    %1184 = vmatprep.subr.bf16.mxu0 0
    %1185 = vmatpush1.bf16.msra.mxu0 0
    %1186 = vmatprep.subr.bf16.mxu0 0
    %1187 = vmatpush1.bf16.msra.mxu0 0
    %1188 = vmatprep.subr.bf16.mxu0 0
    %1189 = vmatpush1.bf16.msra.mxu0 0
    %1190 = vmatprep.subr.bf16.mxu0 0
    %1191 = vmatpush1.bf16.msra.mxu0 0
    %1192 = vmatprep.subr.bf16.mxu0 0
    %1193 = vmatpush1.bf16.msra.mxu0 0
    %1194 = vmatprep.mubr.bf16.mxu0 0
    %1195 = vmatmul.mubr.bf16.gmra.mrb[0].mxu0 %v1107
    %v1196 = vpop.f32.mrb[0].mxu0
    %v1197 = vadd.f32 0.0, %v1196
    %v1198 = vpop.f32.mrb[0].mxu0
    %v1199 = vadd.f32 0.0, %v1198
    %v1200 = vpop.f32.mrb[0].mxu0
    %v1201 = vpop.f32.mrb[0].mxu0
    %1202 = vdwg.mxu0
    %v1203 = vadd.f32 %v1024, %v1156
    %v1204 = vadd.f32 %v1025, %v1158
    %v1205 = vadd.f32 %v1026, %v1197
    %v1206 = vadd.f32 %v1027, %v1199
    %1207 = vrot.lane.b32.xlu0 %v148, 113
    %v1208 = vpop.permute.xlu0 %1207
    %1209 = vrot.lane.b32.xlu0 %v149, 113
    %v1210 = vpop.permute.xlu0 %1209
    %1211 = vrot.lane.b32.xlu0 %v150, 113
    %v1212 = vpop.permute.xlu0 %1211
    %1213 = vrot.lane.b32.xlu0 %v151, 113
    %v1214 = vpop.permute.xlu0 %1213
    %vm1215 = vcmp.lt.s32.totalorder %v161, 113
    %v1216 = vsel %vm1215, %v1212, %v1214
    %v1217 = vsel %vm1215, %v1210, %v1212
    %v1218 = vsel %vm1215, %v1208, %v1210
    %v1219 = vsel %vm1215, %v1214, %v1208
    %v1220 = vpack.c.bf16 %v1218, %v1218
    %v1221 = vpack.c.bf16 %v1217, %v1217
    %v1222 = vpack.c.bf16 %v1216, %v1216
    %v1223 = vpack.c.bf16 %v1219, %v1219
    %s1224 = scalar_lea.vmem %s1, 24
    %v1225 = vld [vmem:[%s1224] sm:$0xf]
    %v1228 = vunpack.c.l.s4 1966171168
    %v1229 = vunpack.c.0.s8 %v1228
    %v1230 = vlaneseq
    %v1231 = vshrl.u32 %v1230, 7
    %v1232 = vsub.s32 %v1229, %v1231
    %v1233 = vrot.slane %v1225, %v1232
    %v1234 = vcombine.high %v1233, %v1233
    %v1236 = vunpack.c.l.s4 1966171168
    %v1237 = vunpack.c.0.s8 %v1236
    %v1238 = vlaneseq
    %v1239 = vshrl.u32 %v1238, 7
    %v1240 = vsub.s32 %v1237, %v1239
    %v1241 = vrot.slane %v1233, %v1240
    %v1243 = vunpack.c.l.s4 1966171168
    %v1244 = vunpack.c.0.s8 %v1243
    %v1245 = vlaneseq
    %v1246 = vshrl.u32 %v1245, 7
    %v1247 = vsub.s32 %v1244, %v1246
    %v1248 = vrot.slane %v1234, %v1247
    %v1249 = vcombine.high %v1241, %v1241
    %v1250 = vcombine.high %v1248, %v1248
    %v1252 = vpack.i.b16 %v1241, %v1241
    %v1254 = vlaneseq
    %v1255 = vshrl.u32 %v1254, 7
    %v1256 = vsub.s32 0, %v1255
    %v1257 = vrot.slane %v1252, %v1256
    %v1259 = vpack.i.b16 %v1248, %v1248
    %v1261 = vlaneseq
    %v1262 = vshrl.u32 %v1261, 7
    %v1263 = vsub.s32 0, %v1262
    %v1264 = vrot.slane %v1259, %v1263
    %v1266 = vpack.i.b16 %v1249, %v1249
    %v1268 = vlaneseq
    %v1269 = vshrl.u32 %v1268, 7
    %v1270 = vsub.s32 0, %v1269
    %v1271 = vrot.slane %v1266, %v1270
    %v1273 = vpack.i.b16 %v1250, %v1250
    %v1275 = vlaneseq
    %v1276 = vshrl.u32 %v1275, 7
    %v1277 = vsub.s32 0, %v1276
    %v1278 = vrot.slane %v1273, %v1277
    %v1279 = vmul.bf16 %v1220, %v1257
    %v1280 = vmul.bf16 %v1221, %v1264
    %v1281 = vmul.bf16 %v1222, %v1271
    %v1282 = vmul.bf16 %v1223, %v1278
    %s1283 = scalar_lea.vmem %s4, 24
    %v1284 = vld [vmem:[%s1283] sm:$0xf]
    %v1286 = vsel %vm308, %v1284, 0
    %v1289 = vsel %vm312, %v1279, 0
    %v1292 = vsel %vm312, %v1280, 0
    %v1295 = vsel %vm312, %v1281, 0
    %v1298 = vsel %vm312, %v1282, 0
    %1300 = vmatprep.subr.bf16.mxu0 %v1292
    %1301 = vmatpush1.bf16.msra.mxu0 %v1289
    %1302 = vmatprep.subr.bf16.mxu0 0
    %1303 = vmatpush1.bf16.msra.mxu0 0
    %1304 = vmatprep.subr.bf16.mxu0 0
    %1305 = vmatpush1.bf16.msra.mxu0 0
    %1306 = vmatprep.subr.bf16.mxu0 0
    %1307 = vmatpush1.bf16.msra.mxu0 0
    %1308 = vmatprep.subr.bf16.mxu0 0
    %1309 = vmatpush1.bf16.msra.mxu0 0
    %1310 = vmatprep.subr.bf16.mxu0 0
    %1311 = vmatpush1.bf16.msra.mxu0 0
    %1312 = vmatprep.subr.bf16.mxu0 0
    %1313 = vmatpush1.bf16.msra.mxu0 0
    %1314 = vmatprep.subr.bf16.mxu0 0
    %1315 = vmatpush1.bf16.msra.mxu0 0
    %1316 = vmatprep.subr.bf16.mxu0 0
    %1317 = vmatpush1.bf16.msra.mxu0 0
    %1318 = vmatprep.subr.bf16.mxu0 0
    %1319 = vmatpush1.bf16.msra.mxu0 0
    %1320 = vmatprep.subr.bf16.mxu0 0
    %1321 = vmatpush1.bf16.msra.mxu0 0
    %1322 = vmatprep.subr.bf16.mxu0 0
    %1323 = vmatpush1.bf16.msra.mxu0 0
    %1324 = vmatprep.subr.bf16.mxu0 0
    %1325 = vmatpush1.bf16.msra.mxu0 0
    %1326 = vmatprep.subr.bf16.mxu0 0
    %1327 = vmatpush1.bf16.msra.mxu0 0
    %1328 = vmatprep.subr.bf16.mxu0 0
    %1329 = vmatpush1.bf16.msra.mxu0 0
    %1330 = vmatprep.subr.bf16.mxu0 0
    %1331 = vmatpush1.bf16.msra.mxu0 0
    %1332 = vmatprep.mubr.bf16.mxu0 0
    %1333 = vmatmul.mubr.bf16.gmra.mrb[0].mxu0 %v1286
    %v1334 = vpop.f32.mrb[0].mxu0
    %v1335 = vadd.f32 0.0, %v1334
    %v1336 = vpop.f32.mrb[0].mxu0
    %v1337 = vadd.f32 0.0, %v1336
    %v1338 = vpop.f32.mrb[0].mxu0
    %v1339 = vpop.f32.mrb[0].mxu0
    %1340 = vdwg.mxu0
    %1341 = vmatprep.subr.bf16.mxu0 %v1298
    %1342 = vmatpush1.bf16.msra.mxu0 %v1295
    %1343 = vmatprep.subr.bf16.mxu0 0
    %1344 = vmatpush1.bf16.msra.mxu0 0
    %1345 = vmatprep.subr.bf16.mxu0 0
    %1346 = vmatpush1.bf16.msra.mxu0 0
    %1347 = vmatprep.subr.bf16.mxu0 0
    %1348 = vmatpush1.bf16.msra.mxu0 0
    %1349 = vmatprep.subr.bf16.mxu0 0
    %1350 = vmatpush1.bf16.msra.mxu0 0
    %1351 = vmatprep.subr.bf16.mxu0 0
    %1352 = vmatpush1.bf16.msra.mxu0 0
    %1353 = vmatprep.subr.bf16.mxu0 0
    %1354 = vmatpush1.bf16.msra.mxu0 0
    %1355 = vmatprep.subr.bf16.mxu0 0
    %1356 = vmatpush1.bf16.msra.mxu0 0
    %1357 = vmatprep.subr.bf16.mxu0 0
    %1358 = vmatpush1.bf16.msra.mxu0 0
    %1359 = vmatprep.subr.bf16.mxu0 0
    %1360 = vmatpush1.bf16.msra.mxu0 0
    %1361 = vmatprep.subr.bf16.mxu0 0
    %1362 = vmatpush1.bf16.msra.mxu0 0
    %1363 = vmatprep.subr.bf16.mxu0 0
    %1364 = vmatpush1.bf16.msra.mxu0 0
    %1365 = vmatprep.subr.bf16.mxu0 0
    %1366 = vmatpush1.bf16.msra.mxu0 0
    %1367 = vmatprep.subr.bf16.mxu0 0
    %1368 = vmatpush1.bf16.msra.mxu0 0
    %1369 = vmatprep.subr.bf16.mxu0 0
    %1370 = vmatpush1.bf16.msra.mxu0 0
    %1371 = vmatprep.subr.bf16.mxu0 0
    %1372 = vmatpush1.bf16.msra.mxu0 0
    %1373 = vmatprep.mubr.bf16.mxu0 0
    %1374 = vmatmul.mubr.bf16.gmra.mrb[0].mxu0 %v1286
    %v1375 = vpop.f32.mrb[0].mxu0
    %v1376 = vadd.f32 0.0, %v1375
    %v1377 = vpop.f32.mrb[0].mxu0
    %v1378 = vadd.f32 0.0, %v1377
    %v1379 = vpop.f32.mrb[0].mxu0
    %v1380 = vpop.f32.mrb[0].mxu0
    %1381 = vdwg.mxu0
    %v1382 = vadd.f32 %v1203, %v1335
    %v1383 = vadd.f32 %v1204, %v1337
    %v1384 = vadd.f32 %v1205, %v1376
    %v1385 = vadd.f32 %v1206, %v1378
    %1386 = vrot.lane.b32.xlu0 %v148, 112
    %v1387 = vpop.permute.xlu0 %1386
    %1388 = vrot.lane.b32.xlu0 %v149, 112
    %v1389 = vpop.permute.xlu0 %1388
    %1390 = vrot.lane.b32.xlu0 %v150, 112
    %v1391 = vpop.permute.xlu0 %1390
    %1392 = vrot.lane.b32.xlu0 %v151, 112
    %v1393 = vpop.permute.xlu0 %1392
    %vm1394 = vcmp.lt.s32.totalorder %v161, 112
    %v1395 = vsel %vm1394, %v1391, %v1393
    %v1396 = vsel %vm1394, %v1389, %v1391
    %v1397 = vsel %vm1394, %v1387, %v1389
    %v1398 = vsel %vm1394, %v1393, %v1387
    %v1399 = vpack.c.bf16 %v1397, %v1397
    %v1400 = vpack.c.bf16 %v1396, %v1396
    %v1401 = vpack.c.bf16 %v1395, %v1395
    %v1402 = vpack.c.bf16 %v1398, %v1398
    %s1403 = scalar_lea.vmem %s1, 28
    %v1404 = vld [vmem:[%s1403] sm:$0xf]
    %v1407 = vunpack.c.l.s4 1966171168
    %v1408 = vunpack.c.0.s8 %v1407
    %v1409 = vlaneseq
    %v1410 = vshrl.u32 %v1409, 7
    %v1411 = vsub.s32 %v1408, %v1410
    %v1412 = vrot.slane %v1404, %v1411
    %v1413 = vcombine.high %v1412, %v1412
    %v1415 = vunpack.c.l.s4 1966171168
    %v1416 = vunpack.c.0.s8 %v1415
    %v1417 = vlaneseq
    %v1418 = vshrl.u32 %v1417, 7
    %v1419 = vsub.s32 %v1416, %v1418
    %v1420 = vrot.slane %v1412, %v1419
    %v1422 = vunpack.c.l.s4 1966171168
    %v1423 = vunpack.c.0.s8 %v1422
    %v1424 = vlaneseq
    %v1425 = vshrl.u32 %v1424, 7
    %v1426 = vsub.s32 %v1423, %v1425
    %v1427 = vrot.slane %v1413, %v1426
    %v1428 = vcombine.high %v1420, %v1420
    %v1429 = vcombine.high %v1427, %v1427
    %v1431 = vpack.i.b16 %v1420, %v1420
    %v1433 = vlaneseq
    %v1434 = vshrl.u32 %v1433, 7
    %v1435 = vsub.s32 0, %v1434
    %v1436 = vrot.slane %v1431, %v1435
    %v1438 = vpack.i.b16 %v1427, %v1427
    %v1440 = vlaneseq
    %v1441 = vshrl.u32 %v1440, 7
    %v1442 = vsub.s32 0, %v1441
    %v1443 = vrot.slane %v1438, %v1442
    %v1445 = vpack.i.b16 %v1428, %v1428
    %v1447 = vlaneseq
    %v1448 = vshrl.u32 %v1447, 7
    %v1449 = vsub.s32 0, %v1448
    %v1450 = vrot.slane %v1445, %v1449
    %v1452 = vpack.i.b16 %v1429, %v1429
    %v1454 = vlaneseq
    %v1455 = vshrl.u32 %v1454, 7
    %v1456 = vsub.s32 0, %v1455
    %v1457 = vrot.slane %v1452, %v1456
    %v1458 = vmul.bf16 %v1399, %v1436
    %v1459 = vmul.bf16 %v1400, %v1443
    %v1460 = vmul.bf16 %v1401, %v1450
    %v1461 = vmul.bf16 %v1402, %v1457
    %s1462 = scalar_lea.vmem %s4, 28
    %v1463 = vld [vmem:[%s1462] sm:$0xf]
    %v1465 = vsel %vm308, %v1463, 0
    %v1468 = vsel %vm312, %v1458, 0
    %v1471 = vsel %vm312, %v1459, 0
    %v1474 = vsel %vm312, %v1460, 0
    %v1477 = vsel %vm312, %v1461, 0
    %1479 = vmatprep.subr.bf16.mxu0 %v1471
    %1480 = vmatpush1.bf16.msra.mxu0 %v1468
    %1481 = vmatprep.subr.bf16.mxu0 0
    %1482 = vmatpush1.bf16.msra.mxu0 0
    %1483 = vmatprep.subr.bf16.mxu0 0
    %1484 = vmatpush1.bf16.msra.mxu0 0
    %1485 = vmatprep.subr.bf16.mxu0 0
    %1486 = vmatpush1.bf16.msra.mxu0 0
    %1487 = vmatprep.subr.bf16.mxu0 0
    %1488 = vmatpush1.bf16.msra.mxu0 0
    %1489 = vmatprep.subr.bf16.mxu0 0
    %1490 = vmatpush1.bf16.msra.mxu0 0
    %1491 = vmatprep.subr.bf16.mxu0 0
    %1492 = vmatpush1.bf16.msra.mxu0 0
    %1493 = vmatprep.subr.bf16.mxu0 0
    %1494 = vmatpush1.bf16.msra.mxu0 0
    %1495 = vmatprep.subr.bf16.mxu0 0
    %1496 = vmatpush1.bf16.msra.mxu0 0
    %1497 = vmatprep.subr.bf16.mxu0 0
    %1498 = vmatpush1.bf16.msra.mxu0 0
    %1499 = vmatprep.subr.bf16.mxu0 0
    %1500 = vmatpush1.bf16.msra.mxu0 0
    %1501 = vmatprep.subr.bf16.mxu0 0
    %1502 = vmatpush1.bf16.msra.mxu0 0
    %1503 = vmatprep.subr.bf16.mxu0 0
    %1504 = vmatpush1.bf16.msra.mxu0 0
    %1505 = vmatprep.subr.bf16.mxu0 0
    %1506 = vmatpush1.bf16.msra.mxu0 0
    %1507 = vmatprep.subr.bf16.mxu0 0
    %1508 = vmatpush1.bf16.msra.mxu0 0
    %1509 = vmatprep.subr.bf16.mxu0 0
    %1510 = vmatpush1.bf16.msra.mxu0 0
    %1511 = vmatprep.mubr.bf16.mxu0 0
    %1512 = vmatmul.mubr.bf16.gmra.mrb[0].mxu0 %v1465
    %v1513 = vpop.f32.mrb[0].mxu0
    %v1514 = vadd.f32 0.0, %v1513
    %v1515 = vpop.f32.mrb[0].mxu0
    %v1516 = vadd.f32 0.0, %v1515
    %v1517 = vpop.f32.mrb[0].mxu0
    %v1518 = vpop.f32.mrb[0].mxu0
    %1519 = vdwg.mxu0
    %1520 = vmatprep.subr.bf16.mxu0 %v1477
    %1521 = vmatpush1.bf16.msra.mxu0 %v1474
    %1522 = vmatprep.subr.bf16.mxu0 0
    %1523 = vmatpush1.bf16.msra.mxu0 0
    %1524 = vmatprep.subr.bf16.mxu0 0
    %1525 = vmatpush1.bf16.msra.mxu0 0
    %1526 = vmatprep.subr.bf16.mxu0 0
    %1527 = vmatpush1.bf16.msra.mxu0 0
    %1528 = vmatprep.subr.bf16.mxu0 0
    %1529 = vmatpush1.bf16.msra.mxu0 0
    %1530 = vmatprep.subr.bf16.mxu0 0
    %1531 = vmatpush1.bf16.msra.mxu0 0
    %1532 = vmatprep.subr.bf16.mxu0 0
    %1533 = vmatpush1.bf16.msra.mxu0 0
    %1534 = vmatprep.subr.bf16.mxu0 0
    %1535 = vmatpush1.bf16.msra.mxu0 0
    %1536 = vmatprep.subr.bf16.mxu0 0
    %1537 = vmatpush1.bf16.msra.mxu0 0
    %1538 = vmatprep.subr.bf16.mxu0 0
    %1539 = vmatpush1.bf16.msra.mxu0 0
    %1540 = vmatprep.subr.bf16.mxu0 0
    %1541 = vmatpush1.bf16.msra.mxu0 0
    %1542 = vmatprep.subr.bf16.mxu0 0
    %1543 = vmatpush1.bf16.msra.mxu0 0
    %1544 = vmatprep.subr.bf16.mxu0 0
    %1545 = vmatpush1.bf16.msra.mxu0 0
    %1546 = vmatprep.subr.bf16.mxu0 0
    %1547 = vmatpush1.bf16.msra.mxu0 0
    %1548 = vmatprep.subr.bf16.mxu0 0
    %1549 = vmatpush1.bf16.msra.mxu0 0
    %1550 = vmatprep.subr.bf16.mxu0 0
    %1551 = vmatpush1.bf16.msra.mxu0 0
    %1552 = vmatprep.mubr.bf16.mxu0 0
    %1553 = vmatmul.mubr.bf16.gmra.mrb[0].mxu0 %v1465
    %v1554 = vpop.f32.mrb[0].mxu0
    %v1555 = vadd.f32 0.0, %v1554
    %v1556 = vpop.f32.mrb[0].mxu0
    %v1557 = vadd.f32 0.0, %v1556
    %v1558 = vpop.f32.mrb[0].mxu0
    %v1559 = vpop.f32.mrb[0].mxu0
    %1560 = vdwg.mxu0
    %v1561 = vadd.f32 %v1382, %v1514
    %v1562 = vadd.f32 %v1383, %v1516
    %v1563 = vadd.f32 %v1384, %v1555
    %v1564 = vadd.f32 %v1385, %v1557
    %1565 = vrot.lane.b32.xlu0 %v148, 111
    %v1566 = vpop.permute.xlu0 %1565
    %1567 = vrot.lane.b32.xlu0 %v149, 111
    %v1568 = vpop.permute.xlu0 %1567
    %1569 = vrot.lane.b32.xlu0 %v150, 111
    %v1570 = vpop.permute.xlu0 %1569
    %1571 = vrot.lane.b32.xlu0 %v151, 111
    %v1572 = vpop.permute.xlu0 %1571
    %vm1573 = vcmp.lt.s32.totalorder %v161, 111
    %v1574 = vsel %vm1573, %v1570, %v1572
    %v1575 = vsel %vm1573, %v1568, %v1570
    %v1576 = vsel %vm1573, %v1566, %v1568
    %v1577 = vsel %vm1573, %v1572, %v1566
    %v1578 = vpack.c.bf16 %v1576, %v1576
    %v1579 = vpack.c.bf16 %v1575, %v1575
    %v1580 = vpack.c.bf16 %v1574, %v1574
    %v1581 = vpack.c.bf16 %v1577, %v1577
    %s1582 = scalar_lea.vmem %s1, 32
    %v1583 = vld [vmem:[%s1582] sm:$0xf]
    %v1586 = vunpack.c.l.s4 1966171168
    %v1587 = vunpack.c.0.s8 %v1586
    %v1588 = vlaneseq
    %v1589 = vshrl.u32 %v1588, 7
    %v1590 = vsub.s32 %v1587, %v1589
    %v1591 = vrot.slane %v1583, %v1590
    %v1592 = vcombine.high %v1591, %v1591
    %v1594 = vunpack.c.l.s4 1966171168
    %v1595 = vunpack.c.0.s8 %v1594
    %v1596 = vlaneseq
    %v1597 = vshrl.u32 %v1596, 7
    %v1598 = vsub.s32 %v1595, %v1597
    %v1599 = vrot.slane %v1591, %v1598
    %v1601 = vunpack.c.l.s4 1966171168
    %v1602 = vunpack.c.0.s8 %v1601
    %v1603 = vlaneseq
    %v1604 = vshrl.u32 %v1603, 7
    %v1605 = vsub.s32 %v1602, %v1604
    %v1606 = vrot.slane %v1592, %v1605
    %v1607 = vcombine.high %v1599, %v1599
    %v1608 = vcombine.high %v1606, %v1606
    %v1610 = vpack.i.b16 %v1599, %v1599
    %v1612 = vlaneseq
    %v1613 = vshrl.u32 %v1612, 7
    %v1614 = vsub.s32 0, %v1613
    %v1615 = vrot.slane %v1610, %v1614
    %v1617 = vpack.i.b16 %v1606, %v1606
    %v1619 = vlaneseq
    %v1620 = vshrl.u32 %v1619, 7
    %v1621 = vsub.s32 0, %v1620
    %v1622 = vrot.slane %v1617, %v1621
    %v1624 = vpack.i.b16 %v1607, %v1607
    %v1626 = vlaneseq
    %v1627 = vshrl.u32 %v1626, 7
    %v1628 = vsub.s32 0, %v1627
    %v1629 = vrot.slane %v1624, %v1628
    %v1631 = vpack.i.b16 %v1608, %v1608
    %v1633 = vlaneseq
    %v1634 = vshrl.u32 %v1633, 7
    %v1635 = vsub.s32 0, %v1634
    %v1636 = vrot.slane %v1631, %v1635
    %v1637 = vmul.bf16 %v1578, %v1615
    %v1638 = vmul.bf16 %v1579, %v1622
    %v1639 = vmul.bf16 %v1580, %v1629
    %v1640 = vmul.bf16 %v1581, %v1636
    %s1641 = scalar_lea.vmem %s4, 32
    %v1642 = vld [vmem:[%s1641] sm:$0xf]
    %v1644 = vsel %vm308, %v1642, 0
    %v1647 = vsel %vm312, %v1637, 0
    %v1650 = vsel %vm312, %v1638, 0
    %v1653 = vsel %vm312, %v1639, 0
    %v1656 = vsel %vm312, %v1640, 0
    %1658 = vmatprep.subr.bf16.mxu0 %v1650
    %1659 = vmatpush1.bf16.msra.mxu0 %v1647
    %1660 = vmatprep.subr.bf16.mxu0 0
    %1661 = vmatpush1.bf16.msra.mxu0 0
    %1662 = vmatprep.subr.bf16.mxu0 0
    %1663 = vmatpush1.bf16.msra.mxu0 0
    %1664 = vmatprep.subr.bf16.mxu0 0
    %1665 = vmatpush1.bf16.msra.mxu0 0
    %1666 = vmatprep.subr.bf16.mxu0 0
    %1667 = vmatpush1.bf16.msra.mxu0 0
    %1668 = vmatprep.subr.bf16.mxu0 0
    %1669 = vmatpush1.bf16.msra.mxu0 0
    %1670 = vmatprep.subr.bf16.mxu0 0
    %1671 = vmatpush1.bf16.msra.mxu0 0
    %1672 = vmatprep.subr.bf16.mxu0 0
    %1673 = vmatpush1.bf16.msra.mxu0 0
    %1674 = vmatprep.subr.bf16.mxu0 0
    %1675 = vmatpush1.bf16.msra.mxu0 0
    %1676 = vmatprep.subr.bf16.mxu0 0
    %1677 = vmatpush1.bf16.msra.mxu0 0
    %1678 = vmatprep.subr.bf16.mxu0 0
    %1679 = vmatpush1.bf16.msra.mxu0 0
    %1680 = vmatprep.subr.bf16.mxu0 0
    %1681 = vmatpush1.bf16.msra.mxu0 0
    %1682 = vmatprep.subr.bf16.mxu0 0
    %1683 = vmatpush1.bf16.msra.mxu0 0
    %1684 = vmatprep.subr.bf16.mxu0 0
    %1685 = vmatpush1.bf16.msra.mxu0 0
    %1686 = vmatprep.subr.bf16.mxu0 0
    %1687 = vmatpush1.bf16.msra.mxu0 0
    %1688 = vmatprep.subr.bf16.mxu0 0
    %1689 = vmatpush1.bf16.msra.mxu0 0
    %1690 = vmatprep.mubr.bf16.mxu0 0
    %1691 = vmatmul.mubr.bf16.gmra.mrb[0].mxu0 %v1644
    %v1692 = vpop.f32.mrb[0].mxu0
    %v1693 = vadd.f32 0.0, %v1692
    %v1694 = vpop.f32.mrb[0].mxu0
    %v1695 = vadd.f32 0.0, %v1694
    %v1696 = vpop.f32.mrb[0].mxu0
    %v1697 = vpop.f32.mrb[0].mxu0
    %1698 = vdwg.mxu0
    %1699 = vmatprep.subr.bf16.mxu0 %v1656
    %1700 = vmatpush1.bf16.msra.mxu0 %v1653
    %1701 = vmatprep.subr.bf16.mxu0 0
    %1702 = vmatpush1.bf16.msra.mxu0 0
    %1703 = vmatprep.subr.bf16.mxu0 0
    %1704 = vmatpush1.bf16.msra.mxu0 0
    %1705 = vmatprep.subr.bf16.mxu0 0
    %1706 = vmatpush1.bf16.msra.mxu0 0
    %1707 = vmatprep.subr.bf16.mxu0 0
    %1708 = vmatpush1.bf16.msra.mxu0 0
    %1709 = vmatprep.subr.bf16.mxu0 0
    %1710 = vmatpush1.bf16.msra.mxu0 0
    %1711 = vmatprep.subr.bf16.mxu0 0
    %1712 = vmatpush1.bf16.msra.mxu0 0
    %1713 = vmatprep.subr.bf16.mxu0 0
    %1714 = vmatpush1.bf16.msra.mxu0 0
    %1715 = vmatprep.subr.bf16.mxu0 0
    %1716 = vmatpush1.bf16.msra.mxu0 0
    %1717 = vmatprep.subr.bf16.mxu0 0
    %1718 = vmatpush1.bf16.msra.mxu0 0
    %1719 = vmatprep.subr.bf16.mxu0 0
    %1720 = vmatpush1.bf16.msra.mxu0 0
    %1721 = vmatprep.subr.bf16.mxu0 0
    %1722 = vmatpush1.bf16.msra.mxu0 0
    %1723 = vmatprep.subr.bf16.mxu0 0
    %1724 = vmatpush1.bf16.msra.mxu0 0
    %1725 = vmatprep.subr.bf16.mxu0 0
    %1726 = vmatpush1.bf16.msra.mxu0 0
    %1727 = vmatprep.subr.bf16.mxu0 0
    %1728 = vmatpush1.bf16.msra.mxu0 0
    %1729 = vmatprep.subr.bf16.mxu0 0
    %1730 = vmatpush1.bf16.msra.mxu0 0
    %1731 = vmatprep.mubr.bf16.mxu0 0
    %1732 = vmatmul.mubr.bf16.gmra.mrb[0].mxu0 %v1644
    %v1733 = vpop.f32.mrb[0].mxu0
    %v1734 = vadd.f32 0.0, %v1733
    %v1735 = vpop.f32.mrb[0].mxu0
    %v1736 = vadd.f32 0.0, %v1735
    %v1737 = vpop.f32.mrb[0].mxu0
    %v1738 = vpop.f32.mrb[0].mxu0
    %1739 = vdwg.mxu0
    %v1740 = vadd.f32 %v1561, %v1693
    %v1741 = vadd.f32 %v1562, %v1695
    %v1742 = vadd.f32 %v1563, %v1734
    %v1743 = vadd.f32 %v1564, %v1736
    %v1744 = vld [vmem:[%s5] sm:$0xff]
    %1746 = vset.pattern.permute.xlu0 0
    %1747 = vperm.xlu0 %1746, %v1744
    %v1748 = vpop.permute.xlu0 %1747
    %v1750 = vadd.f32 %v1740, %v1748
    %v1751 = vadd.f32 %v1741, %v1748
    %v1752 = vadd.f32 %v1742, %v1748
    %v1753 = vadd.f32 %v1743, %v1748
    %v1754 = vmax.f32 %v1750, 0.0
    %v1755 = vmax.f32 %v1751, 0.0
    %v1756 = vmax.f32 %v1752, 0.0
    %v1757 = vmax.f32 %v1753, 0.0
    %v1758 = vld [vmem:[%s6] sm:$0xf]
    %v1759 = vld [vmem:[%s6 + $0x4] sm:$0xf]
    %v1760 = vld [vmem:[%s6 + $0x8] sm:$0xf]
    %v1761 = vld [vmem:[%s6 + $0xc] sm:$0xf]
    %v1762 = vpack.c.bf16 %v1754, %v1754
    %v1763 = vpack.c.bf16 %v1755, %v1755
    %v1764 = vpack.c.bf16 %v1756, %v1756
    %v1765 = vpack.c.bf16 %v1757, %v1757
    %v1766 = vld [vmem:[%s7] sm:$0xff]
    %v1767 = vld [vmem:[%s7 + $0x8] sm:$0xff]
    %v1768 = vld [vmem:[%s7 + $0x10] sm:$0xff]
    %v1769 = vld [vmem:[%s7 + $0x18] sm:$0xff]
    %1771 = vset.pattern.permute.xlu0 0
    %1772 = vperm.xlu0 %1771, %v1766
    %v1773 = vpop.permute.xlu0 %1772
    %1776 = vset.pattern.permute.xlu0 0
    %1777 = vperm.xlu0 %1776, %v1767
    %v1778 = vpop.permute.xlu0 %1777
    %1781 = vset.pattern.permute.xlu0 0
    %1782 = vperm.xlu0 %1781, %v1768
    %v1783 = vpop.permute.xlu0 %1782
    %1786 = vset.pattern.permute.xlu0 0
    %1787 = vperm.xlu0 %1786, %v1769
    %v1788 = vpop.permute.xlu0 %1787
    %v1794 = vunpack.c.l.b16 %v1758
    %v1795 = vunpack.c.l.b16 %v1759
    %v1796 = vunpack.c.l.b16 %v1760
    %v1797 = vunpack.c.l.b16 %v1761
    %v1798 = vpack.c.b16 %v1795, %v1794
    %v1799 = vpack.c.b16 %v1797, %v1796
    %v1801 = vsel %vm308, %v1798, 0
    %v1804 = vsel %vm308, %v1799, 0
    %v1807 = vsel %vm312, %v1762, 0
    %v1810 = vsel %vm312, %v1763, 0
    %v1813 = vsel %vm312, %v1764, 0
    %v1816 = vsel %vm312, %v1765, 0
    %1818 = vmatprep.subr.bf16.mxu0 %v1810
    %1819 = vmatpush1.bf16.msra.mxu0 %v1807
    %1820 = vmatprep.subr.bf16.mxu0 0
    %1821 = vmatpush1.bf16.msra.mxu0 0
    %1822 = vmatprep.subr.bf16.mxu0 0
    %1823 = vmatpush1.bf16.msra.mxu0 0
    %1824 = vmatprep.subr.bf16.mxu0 0
    %1825 = vmatpush1.bf16.msra.mxu0 0
    %1826 = vmatprep.subr.bf16.mxu0 0
    %1827 = vmatpush1.bf16.msra.mxu0 0
    %1828 = vmatprep.subr.bf16.mxu0 0
    %1829 = vmatpush1.bf16.msra.mxu0 0
    %1830 = vmatprep.subr.bf16.mxu0 0
    %1831 = vmatpush1.bf16.msra.mxu0 0
    %1832 = vmatprep.subr.bf16.mxu0 0
    %1833 = vmatpush1.bf16.msra.mxu0 0
    %1834 = vmatprep.subr.bf16.mxu0 0
    %1835 = vmatpush1.bf16.msra.mxu0 0
    %1836 = vmatprep.subr.bf16.mxu0 0
    %1837 = vmatpush1.bf16.msra.mxu0 0
    %1838 = vmatprep.subr.bf16.mxu0 0
    %1839 = vmatpush1.bf16.msra.mxu0 0
    %1840 = vmatprep.subr.bf16.mxu0 0
    %1841 = vmatpush1.bf16.msra.mxu0 0
    %1842 = vmatprep.subr.bf16.mxu0 0
    %1843 = vmatpush1.bf16.msra.mxu0 0
    %1844 = vmatprep.subr.bf16.mxu0 0
    %1845 = vmatpush1.bf16.msra.mxu0 0
    %1846 = vmatprep.subr.bf16.mxu0 0
    %1847 = vmatpush1.bf16.msra.mxu0 0
    %1848 = vmatprep.subr.bf16.mxu0 0
    %1849 = vmatpush1.bf16.msra.mxu0 0
    %1850 = vmatprep.mubr.bf16.mxu0 0
    %1851 = vmatmul.mubr.bf16.gmra.mrb[0].mxu0 %v1801
    %v1852 = vpop.f32.mrb[0].mxu0
    %v1853 = vadd.f32 %v1773, %v1852
    %v1854 = vpop.f32.mrb[0].mxu0
    %v1855 = vadd.f32 %v1773, %v1854
    %v1856 = vpop.f32.mrb[0].mxu0
    %v1857 = vadd.f32 %v1778, %v1856
    %v1858 = vpop.f32.mrb[0].mxu0
    %v1859 = vadd.f32 %v1778, %v1858
    %1860 = vmatprep.mubr.bf16.mxu0 0
    %1861 = vmatmul.mubr.bf16.gmra.mrb[0].mxu0 %v1804
    %v1862 = vpop.f32.mrb[0].mxu0
    %v1863 = vadd.f32 %v1783, %v1862
    %v1864 = vpop.f32.mrb[0].mxu0
    %v1865 = vadd.f32 %v1783, %v1864
    %v1866 = vpop.f32.mrb[0].mxu0
    %v1867 = vadd.f32 %v1788, %v1866
    %v1868 = vpop.f32.mrb[0].mxu0
    %v1869 = vadd.f32 %v1788, %v1868
    %1870 = vdwg.mxu0
    %1871 = vmatprep.subr.bf16.mxu0 %v1816
    %1872 = vmatpush1.bf16.msra.mxu0 %v1813
    %1873 = vmatprep.subr.bf16.mxu0 0
    %1874 = vmatpush1.bf16.msra.mxu0 0
    %1875 = vmatprep.subr.bf16.mxu0 0
    %1876 = vmatpush1.bf16.msra.mxu0 0
    %1877 = vmatprep.subr.bf16.mxu0 0
    %1878 = vmatpush1.bf16.msra.mxu0 0
    %1879 = vmatprep.subr.bf16.mxu0 0
    %1880 = vmatpush1.bf16.msra.mxu0 0
    %1881 = vmatprep.subr.bf16.mxu0 0
    %1882 = vmatpush1.bf16.msra.mxu0 0
    %1883 = vmatprep.subr.bf16.mxu0 0
    %1884 = vmatpush1.bf16.msra.mxu0 0
    %1885 = vmatprep.subr.bf16.mxu0 0
    %1886 = vmatpush1.bf16.msra.mxu0 0
    %1887 = vmatprep.subr.bf16.mxu0 0
    %1888 = vmatpush1.bf16.msra.mxu0 0
    %1889 = vmatprep.subr.bf16.mxu0 0
    %1890 = vmatpush1.bf16.msra.mxu0 0
    %1891 = vmatprep.subr.bf16.mxu0 0
    %1892 = vmatpush1.bf16.msra.mxu0 0
    %1893 = vmatprep.subr.bf16.mxu0 0
    %1894 = vmatpush1.bf16.msra.mxu0 0
    %1895 = vmatprep.subr.bf16.mxu0 0
    %1896 = vmatpush1.bf16.msra.mxu0 0
    %1897 = vmatprep.subr.bf16.mxu0 0
    %1898 = vmatpush1.bf16.msra.mxu0 0
    %1899 = vmatprep.subr.bf16.mxu0 0
    %1900 = vmatpush1.bf16.msra.mxu0 0
    %1901 = vmatprep.subr.bf16.mxu0 0
    %1902 = vmatpush1.bf16.msra.mxu0 0
    %1903 = vmatprep.mubr.bf16.mxu0 0
    %1904 = vmatmul.mubr.bf16.gmra.mrb[0].mxu0 %v1801
    %v1905 = vpop.f32.mrb[0].mxu0
    %v1906 = vadd.f32 %v1773, %v1905
    %v1907 = vpop.f32.mrb[0].mxu0
    %v1908 = vadd.f32 %v1773, %v1907
    %v1909 = vpop.f32.mrb[0].mxu0
    %v1910 = vadd.f32 %v1778, %v1909
    %v1911 = vpop.f32.mrb[0].mxu0
    %v1912 = vadd.f32 %v1778, %v1911
    %1913 = vmatprep.mubr.bf16.mxu0 0
    %1914 = vmatmul.mubr.bf16.gmra.mrb[0].mxu0 %v1804
    %v1915 = vpop.f32.mrb[0].mxu0
    %v1916 = vadd.f32 %v1783, %v1915
    %v1917 = vpop.f32.mrb[0].mxu0
    %v1918 = vadd.f32 %v1783, %v1917
    %v1919 = vpop.f32.mrb[0].mxu0
    %v1920 = vadd.f32 %v1788, %v1919
    %v1921 = vpop.f32.mrb[0].mxu0
    %v1922 = vadd.f32 %v1788, %v1921
    %1923 = vdwg.mxu0
    %v1924 = vadd.f32 %v1853, %v31
    %v1925 = vadd.f32 %v1855, %v32
    %v1926 = vadd.f32 %v1906, %v33
    %v1927 = vadd.f32 %v1908, %v34
    %v1928 = vadd.f32 %v1857, %v35
    %v1929 = vadd.f32 %v1859, %v36
    %v1930 = vadd.f32 %v1910, %v37
    %v1931 = vadd.f32 %v1912, %v38
    %v1932 = vadd.f32 %v1863, %v39
    %v1933 = vadd.f32 %v1865, %v40
    %v1934 = vadd.f32 %v1916, %v41
    %v1935 = vadd.f32 %v1918, %v42
    %v1936 = vadd.f32 %v1867, %v43
    %v1937 = vadd.f32 %v1869, %v44
    %v1938 = vadd.f32 %v1920, %v45
    %v1939 = vadd.f32 %v1922, %v46
    %v1940 = vmax.f32 %v1924, 0.0
    %v1941 = vmax.f32 %v1925, 0.0
    %v1942 = vmax.f32 %v1926, 0.0
    %v1943 = vmax.f32 %v1927, 0.0
    %v1944 = vmax.f32 %v1928, 0.0
    %v1945 = vmax.f32 %v1929, 0.0
    %v1946 = vmax.f32 %v1930, 0.0
    %v1947 = vmax.f32 %v1931, 0.0
    %v1948 = vmax.f32 %v1932, 0.0
    %v1949 = vmax.f32 %v1933, 0.0
    %v1950 = vmax.f32 %v1934, 0.0
    %v1951 = vmax.f32 %v1935, 0.0
    %v1952 = vmax.f32 %v1936, 0.0
    %v1953 = vmax.f32 %v1937, 0.0
    %v1954 = vmax.f32 %v1938, 0.0
    %v1955 = vmax.f32 %v1939, 0.0
    %1956 = vst [vmem:[#allocation2] sm:$0xff] %v1940
    %1957 = vst [vmem:[#allocation2 + $0x8] sm:$0xff] %v1941
    %1958 = vst [vmem:[#allocation2 + $0x10] sm:$0xff] %v1942
    %1959 = vst [vmem:[#allocation2 + $0x18] sm:$0xff] %v1943
    %1960 = vst [vmem:[#allocation2 + $0x20] sm:$0xff] %v1944
    %1961 = vst [vmem:[#allocation2 + $0x28] sm:$0xff] %v1945
    %1962 = vst [vmem:[#allocation2 + $0x30] sm:$0xff] %v1946
    %1963 = vst [vmem:[#allocation2 + $0x38] sm:$0xff] %v1947
    %1964 = vst [vmem:[#allocation2 + $0x40] sm:$0xff] %v1948
    %1965 = vst [vmem:[#allocation2 + $0x48] sm:$0xff] %v1949
    %1966 = vst [vmem:[#allocation2 + $0x50] sm:$0xff] %v1950
    %1967 = vst [vmem:[#allocation2 + $0x58] sm:$0xff] %v1951
    %1968 = vst [vmem:[#allocation2 + $0x60] sm:$0xff] %v1952
    %1969 = vst [vmem:[#allocation2 + $0x68] sm:$0xff] %v1953
    %1970 = vst [vmem:[#allocation2 + $0x70] sm:$0xff] %v1954
    %1971 = vst [vmem:[#allocation2 + $0x78] sm:$0xff] %v1955
    // Predicated region
    $region34: #{tpu_custom_call.1} parent=1 // pred_check
      _
    $region35: #{tpu_custom_call.1} parent=1 // pred_check_branch
      %1973 = sbr.rel (0) target = $region37
    $region36: #{tpu_custom_call.1} parent=1 // pred_region
      %s1975 = ssub.s32 2048, 2048
      %1976 = vsyncadd [#allocation3], %s1975
      %s1977 = sshll.u32 [#allocation2], 4
      %s1978 = int_to_ptr.vmem [resolvable:$true] %s1977
      %1983 = dma.vmem_to_hbm [thread:$0]  %s1978, 2048, %s8, [#allocation3], 512, 512, 32
    $region37: #{tpu_custom_call.1} parent=1 // pred_fallthru
      _
    // Predicated region
    $region38: #{tpu_custom_call.1} parent=1 // pred_check
      _
    $region39: #{tpu_custom_call.1} parent=1 // pred_check_branch
      %1985 = sbr.rel (0) target = $region41
    $region40: #{tpu_custom_call.1} parent=1 // pred_region
      %1986 = dma.done [#allocation3], 2048
    $region41: #{tpu_custom_call.1} parent=1 // pred_fallthru
      _
    %1987 = vsyncpa [#allocation3], 1

</llo_original>
